<compile_context>
chip_gen: v6e
topology: v6e:2x2x1
jax: 0.10.0
libtpu: 0.0.40
codegen_flags: <defaults>
</compile_context>

<pallas_src>
import jax
import jax.numpy as jnp
from jax.experimental import pallas as pl
from jax.experimental.pallas import tpu as pltpu

_EPS = 1e-5
_VMEM_LIMIT_BYTES = 32 * 1024 * 1024  # safe on v5e/v6e (128 MiB) and v7x (64 MiB physical)


def _round_up(v, m):
    return (v + m - 1) // m * m


def _acc_params():
    # Stats accumulate across the row-tile axis -> must be "arbitrary".
    return pltpu.CompilerParams(dimension_semantics=("arbitrary",),
                                vmem_limit_bytes=_VMEM_LIMIT_BYTES)


def _par_params():
    # Pure per-tile work -> shard across TensorCores on v7x.
    return pltpu.CompilerParams(dimension_semantics=("parallel",),
                                vmem_limit_bytes=_VMEM_LIMIT_BYTES)


# --------------------------------------------------------------------------- kernels


def _linear_stats_kernel(x_ref, w_ref, h_ref, s_ref, q_ref):
    """h = x @ W (bf16 MXU, f32 acc); accumulate per-feature sum / sum-of-squares."""
    @pl.when(pl.program_id(0) == 0)
    def _():
        s_ref[...] = jnp.zeros_like(s_ref)
        q_ref[...] = jnp.zeros_like(q_ref)

    h = jnp.dot(x_ref[...], w_ref[...], preferred_element_type=jnp.float32)
    h_ref[...] = h
    s_ref[...] += jnp.sum(h, axis=0, keepdims=True)
    q_ref[...] += jnp.sum(h * h, axis=0, keepdims=True)


def _make_bn_relu_linear_stats_kernel(n_real, needs_mask):
    """BN(full-batch stats, affine) -> ReLU -> matmul with next W -> new stats."""
    inv_n = 1.0 / float(n_real)

    def kernel(h_ref, s_ref, q_ref, g_ref, b_ref, w_ref, h2_ref, s2_ref, q2_ref):
        @pl.when(pl.program_id(0) == 0)
        def _():
            s2_ref[...] = jnp.zeros_like(s2_ref)
            q2_ref[...] = jnp.zeros_like(q2_ref)

        # Fold BN into a single per-feature scale/shift.
        mean = s_ref[...] * inv_n
        var = q_ref[...] * inv_n - mean * mean
        scale = g_ref[...] * jax.lax.rsqrt(var + _EPS)
        shift = b_ref[...] - mean * scale

        act = jnp.maximum(h_ref[...] * scale + shift, 0.0)

        if needs_mask:
            # Zero padded batch rows so they do not pollute the next stage's stats.
            rows = h_ref.shape[0]
            ridx = (pl.program_id(0) * rows
                    + jax.lax.broadcasted_iota(jnp.int32, (rows, 1), 0))
            act = jnp.where(ridx < n_real, act, 0.0)

        h2 = jnp.dot(act.astype(jnp.bfloat16), w_ref[...],
                     preferred_element_type=jnp.float32)
        h2_ref[...] = h2
        s2_ref[...] += jnp.sum(h2, axis=0, keepdims=True)
        q2_ref[...] += jnp.sum(h2 * h2, axis=0, keepdims=True)

    return kernel


def _make_bn_final_kernel(n_real, affine, relu):
    """Final BN (optionally affine, optionally followed by ReLU)."""
    inv_n = 1.0 / float(n_real)

    def kernel(*refs):
        if affine:
            h_ref, s_ref, q_ref, g_ref, b_ref, o_ref = refs
        else:
            h_ref, s_ref, q_ref, o_ref = refs

        mean = s_ref[...] * inv_n
        var = q_ref[...] * inv_n - mean * mean
        rstd = jax.lax.rsqrt(var + _EPS)

        if affine:
            scale = g_ref[...] * rstd
            shift = b_ref[...] - mean * scale
            out = h_ref[...] * scale + shift
        else:
            out = (h_ref[...] - mean) * rstd
        if relu:
            out = jnp.maximum(out, 0.0)
        o_ref[...] = out.astype(o_ref.dtype)

    return kernel


# --------------------------------------------------------------------------- pallas_call wrappers


def _linear_stats(x_p, w, *, n_tile):
    n_pad, f_in = x_p.shape
    f_out = w.shape[1]
    row_in = pl.BlockSpec((n_tile, f_in), lambda i: (i, 0))
    row_out = pl.BlockSpec((n_tile, f_out), lambda i: (i, 0))
    vec = pl.BlockSpec((1, f_out), lambda i: (0, 0))
    w_spec = pl.BlockSpec((f_in, f_out), lambda i: (0, 0))
    return pl.pallas_call(
        _linear_stats_kernel,
        grid=(n_pad // n_tile,),
        in_specs=[row_in, w_spec],
        out_specs=(row_out, vec, vec),
        out_shape=(jax.ShapeDtypeStruct((n_pad, f_out), jnp.float32),
                   jax.ShapeDtypeStruct((1, f_out), jnp.float32),
                   jax.ShapeDtypeStruct((1, f_out), jnp.float32)),
        compiler_params=_acc_params(),
    )(x_p, w)


def _bn_relu_linear_stats(h, s, q, gamma, beta, w, *, n_real, n_tile):
    n_pad, f_in = h.shape
    f_out = w.shape[1]
    kernel = _make_bn_relu_linear_stats_kernel(n_real, n_pad != n_real)
    row_in = pl.BlockSpec((n_tile, f_in), lambda i: (i, 0))
    vec_in = pl.BlockSpec((1, f_in), lambda i: (0, 0))
    w_spec = pl.BlockSpec((f_in, f_out), lambda i: (0, 0))
    row_out = pl.BlockSpec((n_tile, f_out), lambda i: (i, 0))
    vec_out = pl.BlockSpec((1, f_out), lambda i: (0, 0))
    return pl.pallas_call(
        kernel,
        grid=(n_pad // n_tile,),
        in_specs=[row_in, vec_in, vec_in, vec_in, vec_in, w_spec],
        out_specs=(row_out, vec_out, vec_out),
        out_shape=(jax.ShapeDtypeStruct((n_pad, f_out), jnp.float32),
                   jax.ShapeDtypeStruct((1, f_out), jnp.float32),
                   jax.ShapeDtypeStruct((1, f_out), jnp.float32)),
        compiler_params=_acc_params(),
    )(h, s, q, gamma, beta, w)


def _bn_final(h, s, q, *, n_real, n_tile, gamma=None, beta=None, relu=False):
    n_pad, f = h.shape
    affine = gamma is not None
    kernel = _make_bn_final_kernel(n_real, affine, relu)
    row = pl.BlockSpec((n_tile, f), lambda i: (i, 0))
    vec = pl.BlockSpec((1, f), lambda i: (0, 0))
    args = [h, s, q] + ([gamma, beta] if affine else [])
    in_specs = [row, vec, vec] + ([vec, vec] if affine else [])
    return pl.pallas_call(
        kernel,
        grid=(n_pad // n_tile,),
        in_specs=in_specs,
        out_specs=row,
        out_shape=jax.ShapeDtypeStruct((n_pad, f), jnp.float32),
        compiler_params=_par_params(),
    )(*args)


# --------------------------------------------------------------------------- public entry point


def projection_head(x, params, proj_head_selector=3, n_tile=None):
    """Pallas implementation of Projection_Head.forward (training-mode BatchNorm)."""
    n, f = x.shape
    f_pad = _round_up(f, 128)
    out_dim = f if proj_head_selector < 3 else 128

    if n_tile is None:
        n_tile = min(1024, _round_up(n, 8))
    n_tile = max(8, _round_up(n_tile, 8))
    n_pad = _round_up(n, n_tile)
    pad_f = f_pad - f

    # Lane-dense, bf16 inputs for the MXU (zero padding contributes exact zeros).
    x_p = jnp.pad(x, ((0, n_pad - n), (0, pad_f))).astype(jnp.bfloat16)

    def pad_w(w_torch, out_pad):  # PyTorch (out, in) -> transposed & padded (in_pad, out_pad)
        wt = w_torch.T
        return jnp.pad(wt, ((0, f_pad - wt.shape[0]),
                            (0, out_pad - wt.shape[1]))).astype(jnp.bfloat16)

    def pad_v(v):
        return jnp.pad(v.reshape(1, -1).astype(jnp.float32), ((0, 0), (0, pad_f)))

    # NOTE: linear biases b1/b2 are intentionally NOT passed to the kernels — a constant
    # per-feature bias right before training-mode BatchNorm is cancelled by mean subtraction.
    w1 = pad_w(params["w1"], f_pad)
    gamma, beta = pad_v(params["g1"]), pad_v(params["be1"])

    # Stage 1: first_layer (+ stats of its output for first_bn).
    h, s, q = _linear_stats(x_p, w1, n_tile=n_tile)

    if proj_head_selector >= 2:
        # first_bn -> relu -> second_layer (+ stats for second_bn).
        w2 = pad_w(params["w2"], f_pad)
        h, s, q = _bn_relu_linear_stats(h, s, q, gamma, beta, w2,
                                        n_real=n, n_tile=n_tile)
        gamma, beta = pad_v(params["g2"]), pad_v(params["be2"])

    if proj_head_selector >= 3:
        # second_bn -> relu -> third_layer (no bias) (+ stats for third_bn).
        w3 = pad_w(params["w3"], 128)
        h, s, q = _bn_relu_linear_stats(h, s, q, gamma, beta, w3,
                                        n_real=n, n_tile=n_tile)
        out = _bn_final(h, s, q, n_real=n, n_tile=n_tile)            # affine=False, no relu
    else:
        out = _bn_final(h, s, q, n_real=n, n_tile=n_tile,
                        gamma=gamma, beta=beta, relu=True)            # last_bn -> relu

    return out[:n, :out_dim]


# --------------------------------------------------------------------------- pure-JAX reference


def _bn_ref(h, gamma=None, beta=None):
    mean = jnp.mean(h, axis=0, keepdims=True)
    var = jnp.mean(jnp.square(h - mean), axis=0, keepdims=True)
    out = (h - mean) * jax.lax.rsqrt(var + _EPS)
    if gamma is not None:
        out = out * gamma + beta
    return out


def _reference(x, params, proj_head_selector=3):
    """Mirrors the PyTorch module (training-mode BN), with bf16 matmul inputs."""
    def dot16(a, w_torch):
        return jnp.dot(a.astype(jnp.bfloat16), w_torch.T.astype(jnp.bfloat16),
                       preferred_element_type=jnp.float32)

    h = dot16(x, params["w1"]) + params["b1"]
    h = jnp.maximum(_bn_ref(h, params["g1"], params["be1"]), 0.0)
    if proj_head_selector >= 2:
        h = dot16(h, params["w2"]) + params["b2"]
        h = jnp.maximum(_bn_ref(h, params["g2"], params["be2"]), 0.0)
    if proj_head_selector >= 3:
        h = dot16(h, params["w3"])
        h = _bn_ref(h)
    return h


if __name__ == "__main__":
    N, F = 50, 64           # batch, feature ("inputs") size; F is padded 64 -> 128 internally
    N_TILE = 16             # small tile so the grid / cross-tile BN stats path is exercised

    key = jax.random.PRNGKey(0)
    kx, k1, kb1, k2, kb2, k3 = jax.random.split(key, 6)

    x = jax.random.normal(kx, (N, F), jnp.float32)
    params = {
        # PyTorch weight layout: (out_features, in_features)
        "w1": jax.random.normal(k1, (F, F), jnp.float32) / jnp.sqrt(F),
        "b1": 0.1 * jax.random.normal(kb1, (F,), jnp.float32),
        "g1": jnp.ones((F,), jnp.float32),        # BatchNorm1d default init
        "be1": jnp.zeros((F,), jnp.float32),
        "w2": jax.random.normal(k2, (F, F), jnp.float32) / jnp.sqrt(F),
        "b2": 0.1 * jax.random.normal(kb2, (F,), jnp.float32),
        "g2": jnp.ones((F,), jnp.float32),
        "be2": jnp.zeros((F,), jnp.float32),
        "w3": jax.random.normal(k3, (128, F), jnp.float32) / jnp.sqrt(F),  # bias=False
    }

    run = jax.jit(projection_head, static_argnames=("proj_head_selector", "n_tile"))

    for selector in (2, 3):
        out = run(x, params, proj_head_selector=selector, n_tile=N_TILE)
        out = jax.block_until_ready(out)
        ref = _reference(x, params, selector)
        out_dim = F if selector < 3 else 128
        assert out.shape == (N, out_dim), f"bad shape for selector={selector}"
        assert jnp.allclose(out, ref, atol=2e-3, rtol=2e-3), \
            f"mismatch vs. reference (selector={selector})"

    print("KERNEL_OK")
</pallas_src>

<mosaic_0001>
module attributes {stable_mosaic.version = 11 : i64} {
  func.func @kernel(%arg0: i32, %arg1: memref<16x128xf32, #tpu.memory_space<vmem>>, %arg2: memref<1x128xf32, #tpu.memory_space<vmem>>, %arg3: memref<1x128xf32, #tpu.memory_space<vmem>>, %arg4: memref<1x128xf32, #tpu.memory_space<vmem>>, %arg5: memref<1x128xf32, #tpu.memory_space<vmem>>, %arg6: memref<16x128xf32, #tpu.memory_space<vmem>>) attributes {dimension_semantics = [#tpu.dimension_semantics<parallel>], iteration_bounds = array<i64: 4>, scalar_prefetch = 0 : i64, scratch_operands = 0 : i64, tpu.core_type = #tpu.core_type<tc>, window_params = [{transform_indices = @transform_0, window_bounds = array<i64: 16, 128>}, {pipeline_mode = #tpu.pipeline_mode<synchronous>, transform_indices = @transform_1, window_bounds = array<i64: 1, 128>}, {pipeline_mode = #tpu.pipeline_mode<synchronous>, transform_indices = @transform_2, window_bounds = array<i64: 1, 128>}, {pipeline_mode = #tpu.pipeline_mode<synchronous>, transform_indices = @transform_3, window_bounds = array<i64: 1, 128>}, {pipeline_mode = #tpu.pipeline_mode<synchronous>, transform_indices = @transform_4, window_bounds = array<i64: 1, 128>}, {transform_indices = @transform_5, window_bounds = array<i64: 16, 128>}]} {
    %c0 = arith.constant 0 : index
    %c0_0 = arith.constant 0 : index
    %0 = vector.load %arg2[%c0, %c0_0] : memref<1x128xf32, #tpu.memory_space<vmem>>, vector<1x128xf32>
    %cst = arith.constant 2.000000e-02 : f32
    %1 = vector.broadcast %cst : f32 to vector<1x128xf32>
    %2 = arith.mulf %0, %1 : vector<1x128xf32>
    %c0_1 = arith.constant 0 : index
    %c0_2 = arith.constant 0 : index
    %3 = vector.load %arg3[%c0_1, %c0_2] : memref<1x128xf32, #tpu.memory_space<vmem>>, vector<1x128xf32>
    %cst_3 = arith.constant 2.000000e-02 : f32
    %4 = vector.broadcast %cst_3 : f32 to vector<1x128xf32>
    %5 = arith.mulf %3, %4 : vector<1x128xf32>
    %6 = arith.mulf %2, %2 : vector<1x128xf32>
    %7 = arith.subf %5, %6 : vector<1x128xf32>
    %cst_4 = arith.constant 9.99999974E-6 : f32
    %8 = vector.broadcast %cst_4 : f32 to vector<1x128xf32>
    %9 = arith.addf %7, %8 : vector<1x128xf32>
    %10 = math.rsqrt %9 : vector<1x128xf32>
    %c0_5 = arith.constant 0 : index
    %c0_6 = arith.constant 0 : index
    %11 = vector.load %arg4[%c0_5, %c0_6] : memref<1x128xf32, #tpu.memory_space<vmem>>, vector<1x128xf32>
    %12 = arith.mulf %11, %10 : vector<1x128xf32>
    %c0_7 = arith.constant 0 : index
    %c0_8 = arith.constant 0 : index
    %13 = vector.load %arg5[%c0_7, %c0_8] : memref<1x128xf32, #tpu.memory_space<vmem>>, vector<1x128xf32>
    %14 = arith.mulf %2, %12 : vector<1x128xf32>
    %15 = arith.subf %13, %14 : vector<1x128xf32>
    %c0_9 = arith.constant 0 : index
    %c0_10 = arith.constant 0 : index
    %16 = vector.load %arg1[%c0_9, %c0_10] : memref<16x128xf32, #tpu.memory_space<vmem>>, vector<16x128xf32>
    %17 = vector.broadcast %12 : vector<1x128xf32> to vector<16x128xf32>
    %18 = arith.mulf %16, %17 : vector<16x128xf32>
    %19 = vector.broadcast %15 : vector<1x128xf32> to vector<16x128xf32>
    %20 = arith.addf %18, %19 : vector<16x128xf32>
    %cst_11 = arith.constant 0.000000e+00 : f32
    %21 = vector.broadcast %cst_11 : f32 to vector<16x128xf32>
    %22 = arith.maximumf %20, %21 : vector<16x128xf32>
    %c0_12 = arith.constant 0 : index
    %c0_13 = arith.constant 0 : index
    %23 = vector.load %arg6[%c0_12, %c0_13] : memref<16x128xf32, #tpu.memory_space<vmem>>, vector<16x128xf32>
    tpu.vector_store %arg6[%c0_12, %c0_13], %22 {strides = array<i32>} : memref<16x128xf32, #tpu.memory_space<vmem>>, vector<16x128xf32>,
    return
  }
  func.func @transform_0(%arg0: i32) -> (i32, i32) {
    %c0_i32 = arith.constant 0 : i32
    %c0_i32_0 = arith.constant 0 : i32
    return %arg0, %c0_i32 : i32, i32
  }
  func.func @transform_1(%arg0: i32) -> (i32, i32) {
    %c0_i32 = arith.constant 0 : i32
    %c0_i32_0 = arith.constant 0 : i32
    %c0_i32_1 = arith.constant 0 : i32
    return %c0_i32, %c0_i32_0 : i32, i32
  }
  func.func @transform_2(%arg0: i32) -> (i32, i32) {
    %c0_i32 = arith.constant 0 : i32
    %c0_i32_0 = arith.constant 0 : i32
    %c0_i32_1 = arith.constant 0 : i32
    return %c0_i32, %c0_i32_0 : i32, i32
  }
  func.func @transform_3(%arg0: i32) -> (i32, i32) {
    %c0_i32 = arith.constant 0 : i32
    %c0_i32_0 = arith.constant 0 : i32
    %c0_i32_1 = arith.constant 0 : i32
    return %c0_i32, %c0_i32_0 : i32, i32
  }
  func.func @transform_4(%arg0: i32) -> (i32, i32) {
    %c0_i32 = arith.constant 0 : i32
    %c0_i32_0 = arith.constant 0 : i32
    %c0_i32_1 = arith.constant 0 : i32
    return %c0_i32, %c0_i32_0 : i32, i32
  }
  func.func @transform_5(%arg0: i32) -> (i32, i32) {
    %c0_i32 = arith.constant 0 : i32
    %c0_i32_0 = arith.constant 0 : i32
    return %arg0, %c0_i32 : i32, i32
  }
}

module attributes {stable_mosaic.version = 11 : i64} {
  func.func @kernel(%arg0: i32, %arg1: memref<16x128xf32, #tpu.memory_space<vmem>>, %arg2: memref<1x128xf32, #tpu.memory_space<vmem>>, %arg3: memref<1x128xf32, #tpu.memory_space<vmem>>, %arg4: memref<1x128xf32, #tpu.memory_space<vmem>>, %arg5: memref<1x128xf32, #tpu.memory_space<vmem>>, %arg6: memref<128x128xbf16, #tpu.memory_space<vmem>>, %arg7: memref<16x128xf32, #tpu.memory_space<vmem>>, %arg8: memref<1x128xf32, #tpu.memory_space<vmem>>, %arg9: memref<1x128xf32, #tpu.memory_space<vmem>>) attributes {dimension_semantics = [#tpu.dimension_semantics<arbitrary>], iteration_bounds = array<i64: 4>, scalar_prefetch = 0 : i64, scratch_operands = 0 : i64, tpu.core_type = #tpu.core_type<tc>, window_params = [{transform_indices = @transform_0, window_bounds = array<i64: 16, 128>}, {pipeline_mode = #tpu.pipeline_mode<synchronous>, transform_indices = @transform_1, window_bounds = array<i64: 1, 128>}, {pipeline_mode = #tpu.pipeline_mode<synchronous>, transform_indices = @transform_2, window_bounds = array<i64: 1, 128>}, {pipeline_mode = #tpu.pipeline_mode<synchronous>, transform_indices = @transform_3, window_bounds = array<i64: 1, 128>}, {pipeline_mode = #tpu.pipeline_mode<synchronous>, transform_indices = @transform_4, window_bounds = array<i64: 1, 128>}, {pipeline_mode = #tpu.pipeline_mode<synchronous>, transform_indices = @transform_5, window_bounds = array<i64: 128, 128>}, {transform_indices = @transform_6, window_bounds = array<i64: 16, 128>}, {pipeline_mode = #tpu.pipeline_mode<synchronous>, transform_indices = @transform_7, window_bounds = array<i64: 1, 128>}, {pipeline_mode = #tpu.pipeline_mode<synchronous>, transform_indices = @transform_8, window_bounds = array<i64: 1, 128>}]} {
    %c0_i32 = arith.constant 0 : i32
    %0 = arith.cmpi eq, %arg0, %c0_i32 : i32
    %1 = arith.extui %0 : i1 to i32
    %c0_i32_0 = arith.constant 0 : i32
    %2 = arith.cmpi ne, %1, %c0_i32_0 : i32
    scf.if %2 {
      %cst_29 = arith.constant 0.000000e+00 : f32
      %51 = vector.broadcast %cst_29 : f32 to vector<1x128xf32>
      %c0_30 = arith.constant 0 : index
      %c0_31 = arith.constant 0 : index
      %52 = vector.load %arg8[%c0_30, %c0_31] : memref<1x128xf32, #tpu.memory_space<vmem>>, vector<1x128xf32>
      tpu.vector_store %arg8[%c0_30, %c0_31], %51 {strides = array<i32>} : memref<1x128xf32, #tpu.memory_space<vmem>>, vector<1x128xf32>,
      %cst_32 = arith.constant 0.000000e+00 : f32
      %53 = vector.broadcast %cst_32 : f32 to vector<1x128xf32>
      %c0_33 = arith.constant 0 : index
      %c0_34 = arith.constant 0 : index
      %54 = vector.load %arg9[%c0_33, %c0_34] : memref<1x128xf32, #tpu.memory_space<vmem>>, vector<1x128xf32>
      tpu.vector_store %arg9[%c0_33, %c0_34], %53 {strides = array<i32>} : memref<1x128xf32, #tpu.memory_space<vmem>>, vector<1x128xf32>,
    } else {
    }
    %c0 = arith.constant 0 : index
    %c0_1 = arith.constant 0 : index
    %3 = vector.load %arg2[%c0, %c0_1] : memref<1x128xf32, #tpu.memory_space<vmem>>, vector<1x128xf32>
    %cst = arith.constant 2.000000e-02 : f32
    %4 = vector.broadcast %cst : f32 to vector<1x128xf32>
    %5 = arith.mulf %3, %4 : vector<1x128xf32>
    %c0_2 = arith.constant 0 : index
    %c0_3 = arith.constant 0 : index
    %6 = vector.load %arg3[%c0_2, %c0_3] : memref<1x128xf32, #tpu.memory_space<vmem>>, vector<1x128xf32>
    %cst_4 = arith.constant 2.000000e-02 : f32
    %7 = vector.broadcast %cst_4 : f32 to vector<1x128xf32>
    %8 = arith.mulf %6, %7 : vector<1x128xf32>
    %9 = arith.mulf %5, %5 : vector<1x128xf32>
    %10 = arith.subf %8, %9 : vector<1x128xf32>
    %c0_5 = arith.constant 0 : index
    %c0_6 = arith.constant 0 : index
    %11 = vector.load %arg4[%c0_5, %c0_6] : memref<1x128xf32, #tpu.memory_space<vmem>>, vector<1x128xf32>
    %cst_7 = arith.constant 9.99999974E-6 : f32
    %12 = vector.broadcast %cst_7 : f32 to vector<1x128xf32>
    %13 = arith.addf %10, %12 : vector<1x128xf32>
    %14 = math.rsqrt %13 : vector<1x128xf32>
    %15 = arith.mulf %11, %14 : vector<1x128xf32>
    %c0_8 = arith.constant 0 : index
    %c0_9 = arith.constant 0 : index
    %16 = vector.load %arg5[%c0_8, %c0_9] : memref<1x128xf32, #tpu.memory_space<vmem>>, vector<1x128xf32>
    %17 = arith.mulf %5, %15 : vector<1x128xf32>
    %18 = arith.subf %16, %17 : vector<1x128xf32>
    %c0_10 = arith.constant 0 : index
    %c0_11 = arith.constant 0 : index
    %19 = vector.load %arg1[%c0_10, %c0_11] : memref<16x128xf32, #tpu.memory_space<vmem>>, vector<16x128xf32>
    %20 = vector.broadcast %15 : vector<1x128xf32> to vector<16x128xf32>
    %21 = arith.mulf %19, %20 : vector<16x128xf32>
    %22 = vector.broadcast %18 : vector<1x128xf32> to vector<16x128xf32>
    %23 = arith.addf %21, %22 : vector<16x128xf32>
    %cst_12 = arith.constant 0.000000e+00 : f32
    %24 = vector.broadcast %cst_12 : f32 to vector<16x128xf32>
    %25 = arith.maximumf %23, %24 : vector<16x128xf32>
    %c16_i32 = arith.constant 16 : i32
    %26 = arith.muli %arg0, %c16_i32 : i32
    %27 = tpu.iota {dimensions = array<i32: 0>} : vector<16x1xi32>
    %28 = vector.broadcast %26 : i32 to vector<16x1xi32>
    %29 = arith.addi %28, %27 : vector<16x1xi32>
    %c50_i32 = arith.constant 50 : i32
    %30 = vector.broadcast %c50_i32 : i32 to vector<16x1xi32>
    %31 = arith.cmpi slt, %29, %30 : vector<16x1xi32>
    %cst_13 = arith.constant 0.000000e+00 : f32
    %32 = vector.shape_cast %31 : vector<16x1xi1> to vector<16x1xi1>
    %33 = vector.broadcast %32 : vector<16x1xi1> to vector<16x128xi1>
    %34 = vector.broadcast %cst_13 : f32 to vector<16x128xf32>
    %35 = arith.select %33, %25, %34 : vector<16x128xi1>, vector<16x128xf32>
    %36 = arith.truncf %35 : vector<16x128xf32> to vector<16x128xbf16>
    %c0_14 = arith.constant 0 : index
    %c0_15 = arith.constant 0 : index
    %37 = vector.load %arg6[%c0_14, %c0_15] : memref<128x128xbf16, #tpu.memory_space<vmem>>, vector<128x128xbf16>
    %cst_16 = arith.constant dense<0.000000e+00> : vector<16x128xf32>
    %38 = tpu.matmul %36, %37, %cst_16 {dimension_numbers = #tpu.dot_dimension_numbers<[1], [0], [0], [1], [0, 0, 1, 1], [], []>} : vector<16x128xbf16>, vector<128x128xbf16>, vector<16x128xf32> -> vector<16x128xf32>
    %c0_17 = arith.constant 0 : index
    %c0_18 = arith.constant 0 : index
    %39 = vector.load %arg7[%c0_17, %c0_18] : memref<16x128xf32, #tpu.memory_space<vmem>>, vector<16x128xf32>
    tpu.vector_store %arg7[%c0_17, %c0_18], %38 {strides = array<i32>} : memref<16x128xf32, #tpu.memory_space<vmem>>, vector<16x128xf32>,
    %c0_19 = arith.constant 0 : index
    %c0_20 = arith.constant 0 : index
    %40 = vector.load %arg8[%c0_19, %c0_20] : memref<1x128xf32, #tpu.memory_space<vmem>>, vector<1x128xf32>
    %cst_21 = arith.constant dense<0.000000e+00> : vector<128xf32>
    %41 = vector.multi_reduction <add>, %38, %cst_21 [0] : vector<16x128xf32> to vector<128xf32>
    %42 = vector.shape_cast %41 : vector<128xf32> to vector<1x128xf32>
    %43 = arith.addf %40, %42 : vector<1x128xf32>
    %c0_22 = arith.constant 0 : index
    %c0_23 = arith.constant 0 : index
    %44 = vector.load %arg8[%c0_22, %c0_23] : memref<1x128xf32, #tpu.memory_space<vmem>>, vector<1x128xf32>
    tpu.vector_store %arg8[%c0_22, %c0_23], %43 {strides = array<i32>} : memref<1x128xf32, #tpu.memory_space<vmem>>, vector<1x128xf32>,
    %c0_24 = arith.constant 0 : index
    %c0_25 = arith.constant 0 : index
    %45 = vector.load %arg9[%c0_24, %c0_25] : memref<1x128xf32, #tpu.memory_space<vmem>>, vector<1x128xf32>
    %46 = arith.mulf %38, %38 : vector<16x128xf32>
    %cst_26 = arith.constant dense<0.000000e+00> : vector<128xf32>
    %47 = vector.multi_reduction <add>, %46, %cst_26 [0] : vector<16x128xf32> to vector<128xf32>
    %48 = vector.shape_cast %47 : vector<128xf32> to vector<1x128xf32>
    %49 = arith.addf %45, %48 : vector<1x128xf32>
    %c0_27 = arith.constant 0 : index
    %c0_28 = arith.constant 0 : index
    %50 = vector.load %arg9[%c0_27, %c0_28] : memref<1x128xf32, #tpu.memory_space<vmem>>, vector<1x128xf32>
    tpu.vector_store %arg9[%c0_27, %c0_28], %49 {strides = array<i32>} : memref<1x128xf32, #tpu.memory_space<vmem>>, vector<1x128xf32>,
    return
  }
  func.func @transform_0(%arg0: i32) -> (i32, i32) {
    %c0_i32 = arith.constant 0 : i32
    %c0_i32_0 = arith.constant 0 : i32
    return %arg0, %c0_i32 : i32, i32
  }
  func.func @transform_1(%arg0: i32) -> (i32, i32) {
    %c0_i32 = arith.constant 0 : i32
    %c0_i32_0 = arith.constant 0 : i32
    %c0_i32_1 = arith.constant 0 : i32
    return %c0_i32, %c0_i32_0 : i32, i32
  }
  func.func @transform_2(%arg0: i32) -> (i32, i32) {
    %c0_i32 = arith.constant 0 : i32
    %c0_i32_0 = arith.constant 0 : i32
    %c0_i32_1 = arith.constant 0 : i32
    return %c0_i32, %c0_i32_0 : i32, i32
  }
  func.func @transform_3(%arg0: i32) -> (i32, i32) {
    %c0_i32 = arith.constant 0 : i32
    %c0_i32_0 = arith.constant 0 : i32
    %c0_i32_1 = arith.constant 0 : i32
    return %c0_i32, %c0_i32_0 : i32, i32
  }
  func.func @transform_4(%arg0: i32) -> (i32, i32) {
    %c0_i32 = arith.constant 0 : i32
    %c0_i32_0 = arith.constant 0 : i32
    %c0_i32_1 = arith.constant 0 : i32
    return %c0_i32, %c0_i32_0 : i32, i32
  }
  func.func @transform_5(%arg0: i32) -> (i32, i32) {
    %c0_i32 = arith.constant 0 : i32
    %c0_i32_0 = arith.constant 0 : i32
    %c0_i32_1 = arith.constant 0 : i32
    return %c0_i32, %c0_i32_0 : i32, i32
  }
  func.func @transform_6(%arg0: i32) -> (i32, i32) {
    %c0_i32 = arith.constant 0 : i32
    %c0_i32_0 = arith.constant 0 : i32
    return %arg0, %c0_i32 : i32, i32
  }
  func.func @transform_7(%arg0: i32) -> (i32, i32) {
    %c0_i32 = arith.constant 0 : i32
    %c0_i32_0 = arith.constant 0 : i32
    %c0_i32_1 = arith.constant 0 : i32
    return %c0_i32, %c0_i32_0 : i32, i32
  }
  func.func @transform_8(%arg0: i32) -> (i32, i32) {
    %c0_i32 = arith.constant 0 : i32
    %c0_i32_0 = arith.constant 0 : i32
    %c0_i32_1 = arith.constant 0 : i32
    return %c0_i32, %c0_i32_0 : i32, i32
  }
}

module attributes {stable_mosaic.version = 11 : i64} {
  func.func @_linear_stats_kernel(%arg0: i32, %arg1: memref<16x128xbf16, #tpu.memory_space<vmem>>, %arg2: memref<128x128xbf16, #tpu.memory_space<vmem>>, %arg3: memref<16x128xf32, #tpu.memory_space<vmem>>, %arg4: memref<1x128xf32, #tpu.memory_space<vmem>>, %arg5: memref<1x128xf32, #tpu.memory_space<vmem>>) attributes {dimension_semantics = [#tpu.dimension_semantics<arbitrary>], iteration_bounds = array<i64: 4>, scalar_prefetch = 0 : i64, scratch_operands = 0 : i64, tpu.core_type = #tpu.core_type<tc>, window_params = [{transform_indices = @transform_0, window_bounds = array<i64: 16, 128>}, {pipeline_mode = #tpu.pipeline_mode<synchronous>, transform_indices = @transform_1, window_bounds = array<i64: 128, 128>}, {transform_indices = @transform_2, window_bounds = array<i64: 16, 128>}, {pipeline_mode = #tpu.pipeline_mode<synchronous>, transform_indices = @transform_3, window_bounds = array<i64: 1, 128>}, {pipeline_mode = #tpu.pipeline_mode<synchronous>, transform_indices = @transform_4, window_bounds = array<i64: 1, 128>}]} {
    %c0_i32 = arith.constant 0 : i32
    %0 = arith.cmpi eq, %arg0, %c0_i32 : i32
    %1 = arith.extui %0 : i1 to i32
    %c0_i32_0 = arith.constant 0 : i32
    %2 = arith.cmpi ne, %1, %c0_i32_0 : i32
    scf.if %2 {
      %cst_16 = arith.constant 0.000000e+00 : f32
      %18 = vector.broadcast %cst_16 : f32 to vector<1x128xf32>
      %c0_17 = arith.constant 0 : index
      %c0_18 = arith.constant 0 : index
      %19 = vector.load %arg4[%c0_17, %c0_18] : memref<1x128xf32, #tpu.memory_space<vmem>>, vector<1x128xf32>
      tpu.vector_store %arg4[%c0_17, %c0_18], %18 {strides = array<i32>} : memref<1x128xf32, #tpu.memory_space<vmem>>, vector<1x128xf32>,
      %cst_19 = arith.constant 0.000000e+00 : f32
      %20 = vector.broadcast %cst_19 : f32 to vector<1x128xf32>
      %c0_20 = arith.constant 0 : index
      %c0_21 = arith.constant 0 : index
      %21 = vector.load %arg5[%c0_20, %c0_21] : memref<1x128xf32, #tpu.memory_space<vmem>>, vector<1x128xf32>
      tpu.vector_store %arg5[%c0_20, %c0_21], %20 {strides = array<i32>} : memref<1x128xf32, #tpu.memory_space<vmem>>, vector<1x128xf32>,
    } else {
    }
    %c0 = arith.constant 0 : index
    %c0_1 = arith.constant 0 : index
    %3 = vector.load %arg1[%c0, %c0_1] : memref<16x128xbf16, #tpu.memory_space<vmem>>, vector<16x128xbf16>
    %c0_2 = arith.constant 0 : index
    %c0_3 = arith.constant 0 : index
    %4 = vector.load %arg2[%c0_2, %c0_3] : memref<128x128xbf16, #tpu.memory_space<vmem>>, vector<128x128xbf16>
    %cst = arith.constant dense<0.000000e+00> : vector<16x128xf32>
    %5 = tpu.matmul %3, %4, %cst {dimension_numbers = #tpu.dot_dimension_numbers<[1], [0], [0], [1], [0, 0, 1, 1], [], []>} : vector<16x128xbf16>, vector<128x128xbf16>, vector<16x128xf32> -> vector<16x128xf32>
    %c0_4 = arith.constant 0 : index
    %c0_5 = arith.constant 0 : index
    %6 = vector.load %arg3[%c0_4, %c0_5] : memref<16x128xf32, #tpu.memory_space<vmem>>, vector<16x128xf32>
    tpu.vector_store %arg3[%c0_4, %c0_5], %5 {strides = array<i32>} : memref<16x128xf32, #tpu.memory_space<vmem>>, vector<16x128xf32>,
    %c0_6 = arith.constant 0 : index
    %c0_7 = arith.constant 0 : index
    %7 = vector.load %arg4[%c0_6, %c0_7] : memref<1x128xf32, #tpu.memory_space<vmem>>, vector<1x128xf32>
    %cst_8 = arith.constant dense<0.000000e+00> : vector<128xf32>
    %8 = vector.multi_reduction <add>, %5, %cst_8 [0] : vector<16x128xf32> to vector<128xf32>
    %9 = vector.shape_cast %8 : vector<128xf32> to vector<1x128xf32>
    %10 = arith.addf %7, %9 : vector<1x128xf32>
    %c0_9 = arith.constant 0 : index
    %c0_10 = arith.constant 0 : index
    %11 = vector.load %arg4[%c0_9, %c0_10] : memref<1x128xf32, #tpu.memory_space<vmem>>, vector<1x128xf32>
    tpu.vector_store %arg4[%c0_9, %c0_10], %10 {strides = array<i32>} : memref<1x128xf32, #tpu.memory_space<vmem>>, vector<1x128xf32>,
    %c0_11 = arith.constant 0 : index
    %c0_12 = arith.constant 0 : index
    %12 = vector.load %arg5[%c0_11, %c0_12] : memref<1x128xf32, #tpu.memory_space<vmem>>, vector<1x128xf32>
    %13 = arith.mulf %5, %5 : vector<16x128xf32>
    %cst_13 = arith.constant dense<0.000000e+00> : vector<128xf32>
    %14 = vector.multi_reduction <add>, %13, %cst_13 [0] : vector<16x128xf32> to vector<128xf32>
    %15 = vector.shape_cast %14 : vector<128xf32> to vector<1x128xf32>
    %16 = arith.addf %12, %15 : vector<1x128xf32>
    %c0_14 = arith.constant 0 : index
    %c0_15 = arith.constant 0 : index
    %17 = vector.load %arg5[%c0_14, %c0_15] : memref<1x128xf32, #tpu.memory_space<vmem>>, vector<1x128xf32>
    tpu.vector_store %arg5[%c0_14, %c0_15], %16 {strides = array<i32>} : memref<1x128xf32, #tpu.memory_space<vmem>>, vector<1x128xf32>,
    return
  }
  func.func @transform_0(%arg0: i32) -> (i32, i32) {
    %c0_i32 = arith.constant 0 : i32
    %c0_i32_0 = arith.constant 0 : i32
    return %arg0, %c0_i32 : i32, i32
  }
  func.func @transform_1(%arg0: i32) -> (i32, i32) {
    %c0_i32 = arith.constant 0 : i32
    %c0_i32_0 = arith.constant 0 : i32
    %c0_i32_1 = arith.constant 0 : i32
    return %c0_i32, %c0_i32_0 : i32, i32
  }
  func.func @transform_2(%arg0: i32) -> (i32, i32) {
    %c0_i32 = arith.constant 0 : i32
    %c0_i32_0 = arith.constant 0 : i32
    return %arg0, %c0_i32 : i32, i32
  }
  func.func @transform_3(%arg0: i32) -> (i32, i32) {
    %c0_i32 = arith.constant 0 : i32
    %c0_i32_0 = arith.constant 0 : i32
    %c0_i32_1 = arith.constant 0 : i32
    return %c0_i32, %c0_i32_0 : i32, i32
  }
  func.func @transform_4(%arg0: i32) -> (i32, i32) {
    %c0_i32 = arith.constant 0 : i32
    %c0_i32_0 = arith.constant 0 : i32
    %c0_i32_1 = arith.constant 0 : i32
    return %c0_i32, %c0_i32_0 : i32, i32
  }
}

</mosaic_0001>

<llo_original>
// kernel: projection_head.5
$region0: #{projection_head.5}
  #allocation0 [shape = 'u32[]', space=smem, size = 0x4, offset = 0x4, fixed_abs, tag = 'smem constant byte address 0x4 - core index']
  #allocation1 [shape = 'u32[144,128]{1,0:T(1,128)}', space=vmem, size = 0x12000, scoped, tag = 'internal scratch']
  %s0 = inlined_call_operand.vmem [shape: f32[64,128], index: 0, kind: input, shape index: {}]
  %s1 = inlined_call_operand.vmem [shape: f32[1,128], index: 1, kind: input, shape index: {}]
  %s2 = inlined_call_operand.vmem [shape: f32[1,128], index: 2, kind: input, shape index: {}]
  %s3 = inlined_call_operand.vmem [shape: f32[1,128], index: 3, kind: input, shape index: {}]
  %s4 = inlined_call_operand.vmem [shape: f32[1,128], index: 4, kind: input, shape index: {}]
  %s5 = inlined_call_operand.vmem [shape: f32[64,128], index: 5, kind: output, shape index: {}]
  %s6 = sld [smem:[#allocation0]]
  $region53: #{projection_head.5} parent=0
    _
  %s8 = ssub.s32 1, %s6
  %s9 = scalar_select 0, %s8, %s6
  loop: start=0, step=1, limit=6
  $region2: #{projection_head.5} parent=0 // loop_pre_header
    _
  $region3: #{projection_head.5} parent=0 // loop_header
    %s11 = sphi 0, %s15
    %p12 = scmp.ge.s32.totalorder %s11, 6
    %s21 = sphi 0, %s23
    %s24 = sphi 0, %s21
    %s25 = sphi 0, %s24
    %s41 = sphi 0, %s25
    %s45 = sphi 0, %s45
    %s47 = sphi 0, %s45
    %s48 = sphi 0, %s47
    %s62 = sphi 0, %s48
    %s66 = sphi 0, %s66
    %s68 = sphi 0, %s66
    %s69 = sphi 0, %s68
    %s83 = sphi 0, %s69
    %s87 = sphi 0, %s87
    %s89 = sphi 0, %s87
    %s90 = sphi 0, %s89
    %s104 = sphi 0, %s90
    %s108 = sphi 0, %s108
    %s110 = sphi 0, %s108
    %s111 = sphi 0, %s110
    %s125 = sphi 0, %s111
    %s131 = sphi 0, %s133
    %s134 = sphi 0, %s131
    %s135 = sphi 0, %s134
    %s151 = sphi 0, %s135
  $region4: #{projection_head.5} parent=0 // loop_header_branch
    %14 = sbr.rel (%p12) target = $region8
  $region5: #{projection_head.5} parent=0 // loop_body
    %s16 = ssub.s32 %s11, 1
    %s17 = ssub.s32 %s11, 2
    %s18 = sadd.s32 %s11, 1
    %s19 = ssub.s32 %s11, %s18
    %p20 = scmp.eq.s32.totalorder %s19, 0
    %s22 = sadd.s32 %s21, 1
    %s23 = scalar_select %p20, %s21, %s22
    %p26 = pneg %p20
    %p27 = scmp.eq.s32.totalorder %s11, 3
    %p28 = por %p26, %p27
    %p29 = scmp.ne.s32.totalorder %s21, %s24
    %p30 = scmp.eq.s32.totalorder %s11, 0
    %p31 = por %p29, %p30
    %p32 = scmp.ne.s32.totalorder %s21, %s24
    %p33 = scmp.eq.s32.totalorder %s16, 3
    %p34 = por %p32, %p33
    %p35 = scmp.ne.s32.totalorder %s24, %s25
    %p36 = scmp.eq.s32.totalorder %s16, 0
    %p37 = por %p35, %p36
    %p38 = scmp.ne.s32.totalorder %s24, %s25
    %p39 = scmp.eq.s32.totalorder %s17, 3
    %p40 = por %p38, %p39
    %p42 = scmp.ne.s32.totalorder %s25, %s41
    %p43 = scmp.eq.s32.totalorder %s17, 0
    %p44 = por %p42, %p43
    %s46 = sadd.s32 %s45, 1
    %p49 = scmp.eq.s32.totalorder %s11, 3
    %p50 = scmp.ne.s32.totalorder %s45, %s47
    %p51 = scmp.eq.s32.totalorder %s11, 0
    %p52 = por %p50, %p51
    %p53 = scmp.ne.s32.totalorder %s45, %s47
    %p54 = scmp.eq.s32.totalorder %s16, 3
    %p55 = por %p53, %p54
    %p56 = scmp.ne.s32.totalorder %s47, %s48
    %p57 = scmp.eq.s32.totalorder %s16, 0
    %p58 = por %p56, %p57
    %p59 = scmp.ne.s32.totalorder %s47, %s48
    %p60 = scmp.eq.s32.totalorder %s17, 3
    %p61 = por %p59, %p60
    %p63 = scmp.ne.s32.totalorder %s48, %s62
    %p64 = scmp.eq.s32.totalorder %s17, 0
    %p65 = por %p63, %p64
    %s67 = sadd.s32 %s66, 1
    %p70 = scmp.eq.s32.totalorder %s11, 3
    %p71 = scmp.ne.s32.totalorder %s66, %s68
    %p72 = scmp.eq.s32.totalorder %s11, 0
    %p73 = por %p71, %p72
    %p74 = scmp.ne.s32.totalorder %s66, %s68
    %p75 = scmp.eq.s32.totalorder %s16, 3
    %p76 = por %p74, %p75
    %p77 = scmp.ne.s32.totalorder %s68, %s69
    %p78 = scmp.eq.s32.totalorder %s16, 0
    %p79 = por %p77, %p78
    %p80 = scmp.ne.s32.totalorder %s68, %s69
    %p81 = scmp.eq.s32.totalorder %s17, 3
    %p82 = por %p80, %p81
    %p84 = scmp.ne.s32.totalorder %s69, %s83
    %p85 = scmp.eq.s32.totalorder %s17, 0
    %p86 = por %p84, %p85
    %s88 = sadd.s32 %s87, 1
    %p91 = scmp.eq.s32.totalorder %s11, 3
    %p92 = scmp.ne.s32.totalorder %s87, %s89
    %p93 = scmp.eq.s32.totalorder %s11, 0
    %p94 = por %p92, %p93
    %p95 = scmp.ne.s32.totalorder %s87, %s89
    %p96 = scmp.eq.s32.totalorder %s16, 3
    %p97 = por %p95, %p96
    %p98 = scmp.ne.s32.totalorder %s89, %s90
    %p99 = scmp.eq.s32.totalorder %s16, 0
    %p100 = por %p98, %p99
    %p101 = scmp.ne.s32.totalorder %s89, %s90
    %p102 = scmp.eq.s32.totalorder %s17, 3
    %p103 = por %p101, %p102
    %p105 = scmp.ne.s32.totalorder %s90, %s104
    %p106 = scmp.eq.s32.totalorder %s17, 0
    %p107 = por %p105, %p106
    %s109 = sadd.s32 %s108, 1
    %p112 = scmp.eq.s32.totalorder %s11, 3
    %p113 = scmp.ne.s32.totalorder %s108, %s110
    %p114 = scmp.eq.s32.totalorder %s11, 0
    %p115 = por %p113, %p114
    %p116 = scmp.ne.s32.totalorder %s108, %s110
    %p117 = scmp.eq.s32.totalorder %s16, 3
    %p118 = por %p116, %p117
    %p119 = scmp.ne.s32.totalorder %s110, %s111
    %p120 = scmp.eq.s32.totalorder %s16, 0
    %p121 = por %p119, %p120
    %p122 = scmp.ne.s32.totalorder %s110, %s111
    %p123 = scmp.eq.s32.totalorder %s17, 3
    %p124 = por %p122, %p123
    %p126 = scmp.ne.s32.totalorder %s111, %s125
    %p127 = scmp.eq.s32.totalorder %s17, 0
    %p128 = por %p126, %p127
    %s129 = ssub.s32 %s11, %s18
    %p130 = scmp.eq.s32.totalorder %s129, 0
    %s132 = sadd.s32 %s131, 1
    %s133 = scalar_select %p130, %s131, %s132
    %p136 = pneg %p130
    %p137 = scmp.eq.s32.totalorder %s11, 3
    %p138 = por %p136, %p137
    %p139 = scmp.ne.s32.totalorder %s131, %s134
    %p140 = scmp.eq.s32.totalorder %s11, 0
    %p141 = por %p139, %p140
    %p142 = scmp.ne.s32.totalorder %s131, %s134
    %p143 = scmp.eq.s32.totalorder %s16, 3
    %p144 = por %p142, %p143
    %p145 = scmp.ne.s32.totalorder %s134, %s135
    %p146 = scmp.eq.s32.totalorder %s16, 0
    %p147 = por %p145, %p146
    %p148 = scmp.ne.s32.totalorder %s134, %s135
    %p149 = scmp.eq.s32.totalorder %s17, 3
    %p150 = por %p148, %p149
    %p152 = scmp.ne.s32.totalorder %s135, %s151
    %p153 = scmp.eq.s32.totalorder %s17, 0
    %p154 = por %p152, %p153
    %p155 = scmp.le.s32.totalorder 1, %s11
    %p156 = scmp.lt.s32.totalorder %s11, 5
    %p157 = pnand %p155, %p156
    %p158 = pneg %p157
    // Predicated region
    $region9: #{projection_head.5} parent=5 // pred_check
      _
    $region10: #{projection_head.5} parent=5 // pred_check_branch
      %160 = sbr.rel (%p157) target = $region12
    $region11: #{projection_head.5} parent=5 // pred_region
      %s161 = ssub.s32 %s11, 1
      // Predicated region
      $region13: #{projection_head.5} parent=11 // pred_check
        %p162 = pneg %p58
      $region14: #{projection_head.5} parent=11 // pred_check_branch
        %164 = sbr.rel (%p162) target = $region16
      $region15: #{projection_head.5} parent=11 // pred_region
        _
      $region16: #{projection_head.5} parent=11 // pred_fallthru
        _
      // Predicated region
      $region17: #{projection_head.5} parent=11 // pred_check
        %p165 = pneg %p79
      $region18: #{projection_head.5} parent=11 // pred_check_branch
        %167 = sbr.rel (%p165) target = $region20
      $region19: #{projection_head.5} parent=11 // pred_region
        _
      $region20: #{projection_head.5} parent=11 // pred_fallthru
        _
      // Predicated region
      $region21: #{projection_head.5} parent=11 // pred_check
        %p168 = pneg %p100
      $region22: #{projection_head.5} parent=11 // pred_check_branch
        %170 = sbr.rel (%p168) target = $region24
      $region23: #{projection_head.5} parent=11 // pred_region
        _
      $region24: #{projection_head.5} parent=11 // pred_fallthru
        _
      // Predicated region
      $region25: #{projection_head.5} parent=11 // pred_check
        %p171 = pneg %p121
      $region26: #{projection_head.5} parent=11 // pred_check_branch
        %173 = sbr.rel (%p171) target = $region28
      $region27: #{projection_head.5} parent=11 // pred_region
        _
      $region28: #{projection_head.5} parent=11 // pred_fallthru
        _
    $region12: #{projection_head.5} parent=5 // pred_fallthru
      _
    %p174 = scmp.lt.s32.totalorder %s11, 4
    // Predicated region
    $region29: #{projection_head.5} parent=5 // pred_check
      %p175 = pneg %p174
    $region30: #{projection_head.5} parent=5 // pred_check_branch
      %177 = sbr.rel (%p175) target = $region32
    $region31: #{projection_head.5} parent=5 // pred_region
      // Predicated region
      $region33: #{projection_head.5} parent=31 // pred_check
        %p178 = pneg %p31
      $region34: #{projection_head.5} parent=31 // pred_check_branch
        %180 = sbr.rel (%p178) target = $region36
      $region35: #{projection_head.5} parent=31 // pred_region
        %s181 = smul.u32 2, %s11
        %p182 = scmp.lt.s32.totalorder %s181, 7
        %s183 = scalar_select %p182, %s181, 7
        %s184 = smul.addr %s183, 8
        %s185 = scalar_lea.vmem %s0, %s184
        %s186 = smul.u32 2, %s11
      $region36: #{projection_head.5} parent=31 // pred_fallthru
        _
    $region32: #{projection_head.5} parent=5 // pred_fallthru
      _
    %p187 = scmp.le.s32.totalorder 1, %s11
    %p188 = scmp.lt.s32.totalorder %s11, 5
    %p189 = pnand %p187, %p188
    %p190 = pneg %p189
    // Predicated region
    $region37: #{projection_head.5} parent=5 // pred_check
      _
    $region38: #{projection_head.5} parent=5 // pred_check_branch
      %192 = sbr.rel (%p189) target = $region40
    $region39: #{projection_head.5} parent=5 // pred_region
      %s193 = ssub.s32 %s11, 1
      %s194 = smul.u32 2, %s16
      %p195 = scmp.lt.s32.totalorder %s194, 7
      %s196 = scalar_select %p195, %s194, 7
      %s197 = smul.addr %s196, 8
      %s198 = scalar_lea.vmem %s0, %s197
      %p199 = pneg %p37
      %p200 = pneg %p34
      %p201 = pneg %p58
      %p202 = pneg %p55
      %p203 = pneg %p79
      %p204 = pneg %p76
      %p205 = pneg %p100
      %p206 = pneg %p97
      %p207 = pneg %p121
      %p208 = pneg %p118
      %p209 = pneg %p147
      %p210 = pneg %p144
      %s211 = smul.u32 2, %s16
      %p212 = scmp.lt.s32.totalorder %s211, 7
      %s213 = scalar_select %p212, %s211, 7
      %s214 = smul.addr %s213, 8
      %s215 = scalar_lea.vmem %s5, %s214
      %s216 = smul.u32 2, %s16
      %p217 = scmp.lt.s32.totalorder %s216, 7
      %s218 = scalar_select %p217, %s216, 7
      %s219 = smul.addr %s218, 8
      %s220 = scalar_lea.vmem %s0, %s219
      %s221 = smul.u32 2, %s16
      %s222 = smul.u32 2, %s16
      %p223 = scmp.lt.s32.totalorder %s222, 7
      %s224 = scalar_select %p223, %s222, 7
      %s225 = smul.addr %s224, 8
      %s226 = scalar_lea.vmem %s5, %s225
      %s227 = smul.u32 2, %s16
      %v228 = vld [vmem:[%s1] sm:$0x1]
      %v229 = vmul.f32 %v228, 0.02
      %v230 = vld [vmem:[%s2] sm:$0x1]
      %v231 = vmul.f32 %v230, 0.02
      %v232 = vmul.f32 %v229, %v229
      %v233 = vsub.f32 %v231, %v232
      %v234 = vadd.f32 %v233, 1e-05
      %v235 = vrsqrt.pop %v234
      %v236 = vld [vmem:[%s3] sm:$0x1]
      %v237 = vmul.f32 %v236, %v235
      %v238 = vld [vmem:[%s4] sm:$0x1]
      %v239 = vmul.f32 %v229, %v237
      %v240 = vsub.f32 %v238, %v239
      %v241 = vld [vmem:[%s220] sm:$0xff]
      %v242 = vld [vmem:[%s220 + $0x8] sm:$0xff]
      %v244 = vlaneseq
      %v245 = vshrl.u32 %v244, 7
      %v246 = vsub.s32 0, %v245
      %v247 = vrot.slane %v237, %v246
      %v249 = vmul.f32 %v241, %v247
      %v250 = vmul.f32 %v242, %v247
      %v252 = vlaneseq
      %v253 = vshrl.u32 %v252, 7
      %v254 = vsub.s32 0, %v253
      %v255 = vrot.slane %v240, %v254
      %v257 = vadd.f32 %v249, %v255
      %v258 = vadd.f32 %v250, %v255
      %v259 = vmax.f32 %v257, 0.0
      %v260 = vmax.f32 %v258, 0.0
      %261 = vst [vmem:[%s226] sm:$0xff] %v259
      %262 = vst [vmem:[%s226 + $0x8] sm:$0xff] %v260
      %s263 = smul.u32 2, %s16
      %p264 = scmp.lt.s32.totalorder %s263, 7
      %s265 = scalar_select %p264, %s263, 7
      %s266 = smul.addr %s265, 8
      %s267 = scalar_lea.vmem %s5, %s266
      // Predicated region
      $region41: #{projection_head.5} parent=39 // pred_check
        %p268 = pneg %p144
      $region42: #{projection_head.5} parent=39 // pred_check_branch
        %270 = sbr.rel (%p268) target = $region44
      $region43: #{projection_head.5} parent=39 // pred_region
        %s271 = smul.u32 2, %s16
      $region44: #{projection_head.5} parent=39 // pred_fallthru
        _
    $region40: #{projection_head.5} parent=5 // pred_fallthru
      _
    %p272 = scmp.le.s32.totalorder 2, %s11
    // Predicated region
    $region45: #{projection_head.5} parent=5 // pred_check
      %p273 = pneg %p272
    $region46: #{projection_head.5} parent=5 // pred_check_branch
      %275 = sbr.rel (%p273) target = $region48
    $region47: #{projection_head.5} parent=5 // pred_region
      %s276 = ssub.s32 %s11, 2
      // Predicated region
      $region49: #{projection_head.5} parent=47 // pred_check
        %p277 = pneg %p150
      $region50: #{projection_head.5} parent=47 // pred_check_branch
        %279 = sbr.rel (%p277) target = $region52
      $region51: #{projection_head.5} parent=47 // pred_region
        %s280 = smul.u32 2, %s17
        %p281 = scmp.lt.s32.totalorder %s280, 7
        %s282 = scalar_select %p281, %s280, 7
        %s283 = smul.addr %s282, 8
        %s284 = scalar_lea.vmem %s5, %s283
      $region52: #{projection_head.5} parent=47 // pred_fallthru
        _
    $region48: #{projection_head.5} parent=5 // pred_fallthru
      _
  $region6: #{projection_head.5} parent=0 // loop_footer
    %s15 = sadd.s32 1, %s11
  $region7: #{projection_head.5} parent=0 // loop_footer_branch
    %10 = sbr.rel target = $region3
  $region8: #{projection_head.5} parent=0 // loop_exit
    _

// kernel: projection_head.4
$region0: #{projection_head.4}
  #allocation0 [shape = 'u32[]', space=smem, size = 0x4, offset = 0x4, fixed_abs, tag = 'smem constant byte address 0x4 - core index']
  #allocation1 [shape = 'u32[144,128]{1,0:T(1,128)}', space=vmem, size = 0x12000, scoped, tag = 'internal scratch']
  %s0 = inlined_call_operand.vmem [shape: f32[64,128], index: 0, kind: input, shape index: {}]
  %s1 = inlined_call_operand.vmem [shape: f32[1,128], index: 1, kind: input, shape index: {}]
  %s2 = inlined_call_operand.vmem [shape: f32[1,128], index: 2, kind: input, shape index: {}]
  %s3 = inlined_call_operand.vmem [shape: f32[1,128], index: 3, kind: input, shape index: {}]
  %s4 = inlined_call_operand.vmem [shape: f32[1,128], index: 4, kind: input, shape index: {}]
  %s5 = inlined_call_operand.vmem [shape: bf16[128,128], index: 5, kind: input, shape index: {}]
  %s6 = inlined_call_operand.vmem [shape: f32[64,128], index: 6, kind: output, shape index: {0}]
  %s7 = inlined_call_operand.vmem [shape: f32[1,128], index: 7, kind: output, shape index: {1}]
  %s8 = inlined_call_operand.vmem [shape: f32[1,128], index: 8, kind: output, shape index: {2}]
  %9 = xla_tuple %s6, %s7, %s8
  %s10 = sld [smem:[#allocation0]]
  $region77: #{projection_head.4} parent=0
    _
  %s12 = ssub.s32 1, %s10
  %s13 = scalar_select 0, %s12, %s10
  loop: start=0, step=1, limit=6
  $region2: #{projection_head.4} parent=0 // loop_pre_header
    _
  $region3: #{projection_head.4} parent=0 // loop_header
    %s15 = sphi 0, %s19
    %p16 = scmp.ge.s32.totalorder %s15, 6
    %s25 = sphi 0, %s27
    %s28 = sphi 0, %s25
    %s29 = sphi 0, %s28
    %s45 = sphi 0, %s29
    %s49 = sphi 0, %s49
    %s51 = sphi 0, %s49
    %s52 = sphi 0, %s51
    %s66 = sphi 0, %s52
    %s70 = sphi 0, %s70
    %s72 = sphi 0, %s70
    %s73 = sphi 0, %s72
    %s87 = sphi 0, %s73
    %s91 = sphi 0, %s91
    %s93 = sphi 0, %s91
    %s94 = sphi 0, %s93
    %s108 = sphi 0, %s94
    %s112 = sphi 0, %s112
    %s114 = sphi 0, %s112
    %s115 = sphi 0, %s114
    %s129 = sphi 0, %s115
    %s133 = sphi 0, %s133
    %s135 = sphi 0, %s133
    %s136 = sphi 0, %s135
    %s150 = sphi 0, %s136
    %s156 = sphi 0, %s158
    %s159 = sphi 0, %s156
    %s160 = sphi 0, %s159
    %s176 = sphi 0, %s160
    %s180 = sphi 0, %s180
    %s182 = sphi 0, %s180
    %s183 = sphi 0, %s182
    %s197 = sphi 0, %s183
    %s201 = sphi 0, %s201
    %s203 = sphi 0, %s201
    %s204 = sphi 0, %s203
    %s218 = sphi 0, %s204
  $region4: #{projection_head.4} parent=0 // loop_header_branch
    %18 = sbr.rel (%p16) target = $region8
  $region5: #{projection_head.4} parent=0 // loop_body
    %s20 = ssub.s32 %s15, 1
    %s21 = ssub.s32 %s15, 2
    %s22 = sadd.s32 %s15, 1
    %s23 = ssub.s32 %s15, %s22
    %p24 = scmp.eq.s32.totalorder %s23, 0
    %s26 = sadd.s32 %s25, 1
    %s27 = scalar_select %p24, %s25, %s26
    %p30 = pneg %p24
    %p31 = scmp.eq.s32.totalorder %s15, 3
    %p32 = por %p30, %p31
    %p33 = scmp.ne.s32.totalorder %s25, %s28
    %p34 = scmp.eq.s32.totalorder %s15, 0
    %p35 = por %p33, %p34
    %p36 = scmp.ne.s32.totalorder %s25, %s28
    %p37 = scmp.eq.s32.totalorder %s20, 3
    %p38 = por %p36, %p37
    %p39 = scmp.ne.s32.totalorder %s28, %s29
    %p40 = scmp.eq.s32.totalorder %s20, 0
    %p41 = por %p39, %p40
    %p42 = scmp.ne.s32.totalorder %s28, %s29
    %p43 = scmp.eq.s32.totalorder %s21, 3
    %p44 = por %p42, %p43
    %p46 = scmp.ne.s32.totalorder %s29, %s45
    %p47 = scmp.eq.s32.totalorder %s21, 0
    %p48 = por %p46, %p47
    %s50 = sadd.s32 %s49, 1
    %p53 = scmp.eq.s32.totalorder %s15, 3
    %p54 = scmp.ne.s32.totalorder %s49, %s51
    %p55 = scmp.eq.s32.totalorder %s15, 0
    %p56 = por %p54, %p55
    %p57 = scmp.ne.s32.totalorder %s49, %s51
    %p58 = scmp.eq.s32.totalorder %s20, 3
    %p59 = por %p57, %p58
    %p60 = scmp.ne.s32.totalorder %s51, %s52
    %p61 = scmp.eq.s32.totalorder %s20, 0
    %p62 = por %p60, %p61
    %p63 = scmp.ne.s32.totalorder %s51, %s52
    %p64 = scmp.eq.s32.totalorder %s21, 3
    %p65 = por %p63, %p64
    %p67 = scmp.ne.s32.totalorder %s52, %s66
    %p68 = scmp.eq.s32.totalorder %s21, 0
    %p69 = por %p67, %p68
    %s71 = sadd.s32 %s70, 1
    %p74 = scmp.eq.s32.totalorder %s15, 3
    %p75 = scmp.ne.s32.totalorder %s70, %s72
    %p76 = scmp.eq.s32.totalorder %s15, 0
    %p77 = por %p75, %p76
    %p78 = scmp.ne.s32.totalorder %s70, %s72
    %p79 = scmp.eq.s32.totalorder %s20, 3
    %p80 = por %p78, %p79
    %p81 = scmp.ne.s32.totalorder %s72, %s73
    %p82 = scmp.eq.s32.totalorder %s20, 0
    %p83 = por %p81, %p82
    %p84 = scmp.ne.s32.totalorder %s72, %s73
    %p85 = scmp.eq.s32.totalorder %s21, 3
    %p86 = por %p84, %p85
    %p88 = scmp.ne.s32.totalorder %s73, %s87
    %p89 = scmp.eq.s32.totalorder %s21, 0
    %p90 = por %p88, %p89
    %s92 = sadd.s32 %s91, 1
    %p95 = scmp.eq.s32.totalorder %s15, 3
    %p96 = scmp.ne.s32.totalorder %s91, %s93
    %p97 = scmp.eq.s32.totalorder %s15, 0
    %p98 = por %p96, %p97
    %p99 = scmp.ne.s32.totalorder %s91, %s93
    %p100 = scmp.eq.s32.totalorder %s20, 3
    %p101 = por %p99, %p100
    %p102 = scmp.ne.s32.totalorder %s93, %s94
    %p103 = scmp.eq.s32.totalorder %s20, 0
    %p104 = por %p102, %p103
    %p105 = scmp.ne.s32.totalorder %s93, %s94
    %p106 = scmp.eq.s32.totalorder %s21, 3
    %p107 = por %p105, %p106
    %p109 = scmp.ne.s32.totalorder %s94, %s108
    %p110 = scmp.eq.s32.totalorder %s21, 0
    %p111 = por %p109, %p110
    %s113 = sadd.s32 %s112, 1
    %p116 = scmp.eq.s32.totalorder %s15, 3
    %p117 = scmp.ne.s32.totalorder %s112, %s114
    %p118 = scmp.eq.s32.totalorder %s15, 0
    %p119 = por %p117, %p118
    %p120 = scmp.ne.s32.totalorder %s112, %s114
    %p121 = scmp.eq.s32.totalorder %s20, 3
    %p122 = por %p120, %p121
    %p123 = scmp.ne.s32.totalorder %s114, %s115
    %p124 = scmp.eq.s32.totalorder %s20, 0
    %p125 = por %p123, %p124
    %p126 = scmp.ne.s32.totalorder %s114, %s115
    %p127 = scmp.eq.s32.totalorder %s21, 3
    %p128 = por %p126, %p127
    %p130 = scmp.ne.s32.totalorder %s115, %s129
    %p131 = scmp.eq.s32.totalorder %s21, 0
    %p132 = por %p130, %p131
    %s134 = sadd.s32 %s133, 1
    %p137 = scmp.eq.s32.totalorder %s15, 3
    %p138 = scmp.ne.s32.totalorder %s133, %s135
    %p139 = scmp.eq.s32.totalorder %s15, 0
    %p140 = por %p138, %p139
    %p141 = scmp.ne.s32.totalorder %s133, %s135
    %p142 = scmp.eq.s32.totalorder %s20, 3
    %p143 = por %p141, %p142
    %p144 = scmp.ne.s32.totalorder %s135, %s136
    %p145 = scmp.eq.s32.totalorder %s20, 0
    %p146 = por %p144, %p145
    %p147 = scmp.ne.s32.totalorder %s135, %s136
    %p148 = scmp.eq.s32.totalorder %s21, 3
    %p149 = por %p147, %p148
    %p151 = scmp.ne.s32.totalorder %s136, %s150
    %p152 = scmp.eq.s32.totalorder %s21, 0
    %p153 = por %p151, %p152
    %s154 = ssub.s32 %s15, %s22
    %p155 = scmp.eq.s32.totalorder %s154, 0
    %s157 = sadd.s32 %s156, 1
    %s158 = scalar_select %p155, %s156, %s157
    %p161 = pneg %p155
    %p162 = scmp.eq.s32.totalorder %s15, 3
    %p163 = por %p161, %p162
    %p164 = scmp.ne.s32.totalorder %s156, %s159
    %p165 = scmp.eq.s32.totalorder %s15, 0
    %p166 = por %p164, %p165
    %p167 = scmp.ne.s32.totalorder %s156, %s159
    %p168 = scmp.eq.s32.totalorder %s20, 3
    %p169 = por %p167, %p168
    %p170 = scmp.ne.s32.totalorder %s159, %s160
    %p171 = scmp.eq.s32.totalorder %s20, 0
    %p172 = por %p170, %p171
    %p173 = scmp.ne.s32.totalorder %s159, %s160
    %p174 = scmp.eq.s32.totalorder %s21, 3
    %p175 = por %p173, %p174
    %p177 = scmp.ne.s32.totalorder %s160, %s176
    %p178 = scmp.eq.s32.totalorder %s21, 0
    %p179 = por %p177, %p178
    %s181 = sadd.s32 %s180, 1
    %p184 = scmp.eq.s32.totalorder %s15, 3
    %p185 = scmp.ne.s32.totalorder %s180, %s182
    %p186 = scmp.eq.s32.totalorder %s15, 0
    %p187 = por %p185, %p186
    %p188 = scmp.ne.s32.totalorder %s180, %s182
    %p189 = scmp.eq.s32.totalorder %s20, 3
    %p190 = por %p188, %p189
    %p191 = scmp.ne.s32.totalorder %s182, %s183
    %p192 = scmp.eq.s32.totalorder %s20, 0
    %p193 = por %p191, %p192
    %p194 = scmp.ne.s32.totalorder %s182, %s183
    %p195 = scmp.eq.s32.totalorder %s21, 3
    %p196 = por %p194, %p195
    %p198 = scmp.ne.s32.totalorder %s183, %s197
    %p199 = scmp.eq.s32.totalorder %s21, 0
    %p200 = por %p198, %p199
    %s202 = sadd.s32 %s201, 1
    %p205 = scmp.eq.s32.totalorder %s15, 3
    %p206 = scmp.ne.s32.totalorder %s201, %s203
    %p207 = scmp.eq.s32.totalorder %s15, 0
    %p208 = por %p206, %p207
    %p209 = scmp.ne.s32.totalorder %s201, %s203
    %p210 = scmp.eq.s32.totalorder %s20, 3
    %p211 = por %p209, %p210
    %p212 = scmp.ne.s32.totalorder %s203, %s204
    %p213 = scmp.eq.s32.totalorder %s20, 0
    %p214 = por %p212, %p213
    %p215 = scmp.ne.s32.totalorder %s203, %s204
    %p216 = scmp.eq.s32.totalorder %s21, 3
    %p217 = por %p215, %p216
    %p219 = scmp.ne.s32.totalorder %s204, %s218
    %p220 = scmp.eq.s32.totalorder %s21, 0
    %p221 = por %p219, %p220
    %p222 = scmp.le.s32.totalorder 1, %s15
    %p223 = scmp.lt.s32.totalorder %s15, 5
    %p224 = pnand %p222, %p223
    %p225 = pneg %p224
    // Predicated region
    $region9: #{projection_head.4} parent=5 // pred_check
      _
    $region10: #{projection_head.4} parent=5 // pred_check_branch
      %227 = sbr.rel (%p224) target = $region12
    $region11: #{projection_head.4} parent=5 // pred_region
      %s228 = ssub.s32 %s15, 1
      // Predicated region
      $region13: #{projection_head.4} parent=11 // pred_check
        %p229 = pneg %p62
      $region14: #{projection_head.4} parent=11 // pred_check_branch
        %231 = sbr.rel (%p229) target = $region16
      $region15: #{projection_head.4} parent=11 // pred_region
        _
      $region16: #{projection_head.4} parent=11 // pred_fallthru
        _
      // Predicated region
      $region17: #{projection_head.4} parent=11 // pred_check
        %p232 = pneg %p83
      $region18: #{projection_head.4} parent=11 // pred_check_branch
        %234 = sbr.rel (%p232) target = $region20
      $region19: #{projection_head.4} parent=11 // pred_region
        _
      $region20: #{projection_head.4} parent=11 // pred_fallthru
        _
      // Predicated region
      $region21: #{projection_head.4} parent=11 // pred_check
        %p235 = pneg %p104
      $region22: #{projection_head.4} parent=11 // pred_check_branch
        %237 = sbr.rel (%p235) target = $region24
      $region23: #{projection_head.4} parent=11 // pred_region
        _
      $region24: #{projection_head.4} parent=11 // pred_fallthru
        _
      // Predicated region
      $region25: #{projection_head.4} parent=11 // pred_check
        %p238 = pneg %p125
      $region26: #{projection_head.4} parent=11 // pred_check_branch
        %240 = sbr.rel (%p238) target = $region28
      $region27: #{projection_head.4} parent=11 // pred_region
        _
      $region28: #{projection_head.4} parent=11 // pred_fallthru
        _
      // Predicated region
      $region29: #{projection_head.4} parent=11 // pred_check
        %p241 = pneg %p146
      $region30: #{projection_head.4} parent=11 // pred_check_branch
        %243 = sbr.rel (%p241) target = $region32
      $region31: #{projection_head.4} parent=11 // pred_region
        _
      $region32: #{projection_head.4} parent=11 // pred_fallthru
        _
    $region12: #{projection_head.4} parent=5 // pred_fallthru
      _
    %p244 = scmp.lt.s32.totalorder %s15, 4
    // Predicated region
    $region33: #{projection_head.4} parent=5 // pred_check
      %p245 = pneg %p244
    $region34: #{projection_head.4} parent=5 // pred_check_branch
      %247 = sbr.rel (%p245) target = $region36
    $region35: #{projection_head.4} parent=5 // pred_region
      // Predicated region
      $region37: #{projection_head.4} parent=35 // pred_check
        %p248 = pneg %p35
      $region38: #{projection_head.4} parent=35 // pred_check_branch
        %250 = sbr.rel (%p248) target = $region40
      $region39: #{projection_head.4} parent=35 // pred_region
        %s251 = smul.u32 2, %s15
        %p252 = scmp.lt.s32.totalorder %s251, 7
        %s253 = scalar_select %p252, %s251, 7
        %s254 = smul.addr %s253, 8
        %s255 = scalar_lea.vmem %s0, %s254
        %s256 = smul.u32 2, %s15
      $region40: #{projection_head.4} parent=35 // pred_fallthru
        _
    $region36: #{projection_head.4} parent=5 // pred_fallthru
      _
    %p257 = scmp.le.s32.totalorder 1, %s15
    %p258 = scmp.lt.s32.totalorder %s15, 5
    %p259 = pnand %p257, %p258
    %p260 = pneg %p259
    // Predicated region
    $region41: #{projection_head.4} parent=5 // pred_check
      _
    $region42: #{projection_head.4} parent=5 // pred_check_branch
      %262 = sbr.rel (%p259) target = $region44
    $region43: #{projection_head.4} parent=5 // pred_region
      %s263 = ssub.s32 %s15, 1
      %s264 = smul.u32 2, %s20
      %p265 = scmp.lt.s32.totalorder %s264, 7
      %s266 = scalar_select %p265, %s264, 7
      %s267 = smul.addr %s266, 8
      %s268 = scalar_lea.vmem %s0, %s267
      %p269 = pneg %p41
      %p270 = pneg %p38
      %p271 = pneg %p62
      %p272 = pneg %p59
      %p273 = pneg %p83
      %p274 = pneg %p80
      %p275 = pneg %p104
      %p276 = pneg %p101
      %p277 = pneg %p125
      %p278 = pneg %p122
      %p279 = pneg %p146
      %p280 = pneg %p143
      %p281 = pneg %p172
      %p282 = pneg %p169
      %s283 = smul.u32 2, %s20
      %p284 = scmp.lt.s32.totalorder %s283, 7
      %s285 = scalar_select %p284, %s283, 7
      %s286 = smul.addr %s285, 8
      %s287 = scalar_lea.vmem %s6, %s286
      %p288 = pneg %p193
      %p289 = pneg %p190
      %p290 = pneg %p214
      %p291 = pneg %p211
      %s292 = smul.u32 2, %s20
      %p293 = scmp.lt.s32.totalorder %s292, 7
      %s294 = scalar_select %p293, %s292, 7
      %s295 = smul.addr %s294, 8
      %s296 = scalar_lea.vmem %s0, %s295
      %s297 = smul.u32 2, %s20
      %s298 = smul.u32 2, %s20
      %p299 = scmp.lt.s32.totalorder %s298, 7
      %s300 = scalar_select %p299, %s298, 7
      %s301 = smul.addr %s300, 8
      %s302 = scalar_lea.vmem %s6, %s301
      %s303 = smul.u32 2, %s20
      %p305 = scmp.eq.s32.totalorder %s20, 0
      // Predicated region
      $region45: #{projection_head.4} parent=43 // pred_check
        %p306 = pneg %p305
      $region46: #{projection_head.4} parent=43 // pred_check_branch
        %308 = sbr.rel (%p306) target = $region48
      $region47: #{projection_head.4} parent=43 // pred_region
        %309 = vst [vmem:[%s7] sm:$0x1] 0.0
        %310 = vst [vmem:[%s8] sm:$0x1] 0.0
      $region48: #{projection_head.4} parent=43 // pred_fallthru
        _
      %v311 = vld [vmem:[%s1] sm:$0x1]
      %v312 = vmul.f32 %v311, 0.02
      %v313 = vld [vmem:[%s2] sm:$0x1]
      %v314 = vmul.f32 %v313, 0.02
      %v315 = vmul.f32 %v312, %v312
      %v316 = vsub.f32 %v314, %v315
      %v317 = vld [vmem:[%s3] sm:$0x1]
      %v318 = vadd.f32 %v316, 1e-05
      %v319 = vrsqrt.pop %v318
      %v320 = vmul.f32 %v317, %v319
      %v321 = vld [vmem:[%s4] sm:$0x1]
      %v322 = vmul.f32 %v312, %v320
      %v323 = vsub.f32 %v321, %v322
      %v324 = vld [vmem:[%s296] sm:$0xff]
      %v325 = vld [vmem:[%s296 + $0x8] sm:$0xff]
      %v327 = vlaneseq
      %v328 = vshrl.u32 %v327, 7
      %v329 = vsub.s32 0, %v328
      %v330 = vrot.slane %v320, %v329
      %v332 = vmul.f32 %v324, %v330
      %v333 = vmul.f32 %v325, %v330
      %v335 = vlaneseq
      %v336 = vshrl.u32 %v335, 7
      %v337 = vsub.s32 0, %v336
      %v338 = vrot.slane %v323, %v337
      %v340 = vadd.f32 %v332, %v338
      %v341 = vadd.f32 %v333, %v338
      %v342 = vmax.f32 %v340, 0.0
      %v343 = vmax.f32 %v341, 0.0
      %s344 = smul.u32 %s20, 16
      %v345 = vlaneseq
      %v346 = vshrl.u32 %v345, 7
      %v347 = vadd.s32 %v346, 8
      %v348 = vstv %s344
      %v349 = vadd.s32 %v348, %v346
      %v350 = vadd.s32 %v348, %v347
      %vm351 = vcmp.lt.s32.totalorder %v349, 50
      %vm352 = vcmp.lt.s32.totalorder %v350, 50
      %v353 = vsel %vm351, 1, 0
      %v354 = vsel %vm352, 1, 0
      %vm355 = vcmp.eq.s32.totalorder %v353, 1
      %vm356 = vcmp.eq.s32.totalorder %v354, 1
      %v357 = vsel %vm355, %v342, 0.0
      %v358 = vsel %vm356, %v343, 0.0
      %v359 = vpack.c.bf16 %v358, %v357
      %v360 = vld [vmem:[%s5] sm:$0xf]
      %v361 = vld [vmem:[%s5 + $0x4] sm:$0xf]
      %v362 = vld [vmem:[%s5 + $0x8] sm:$0xf]
      %v363 = vld [vmem:[%s5 + $0xc] sm:$0xf]
      %v364 = vld [vmem:[%s5 + $0x10] sm:$0xf]
      %v365 = vld [vmem:[%s5 + $0x14] sm:$0xf]
      %v366 = vld [vmem:[%s5 + $0x18] sm:$0xf]
      %v367 = vld [vmem:[%s5 + $0x1c] sm:$0xf]
      %v368 = vld [vmem:[%s5 + $0x20] sm:$0xf]
      %v369 = vld [vmem:[%s5 + $0x24] sm:$0xf]
      %v370 = vld [vmem:[%s5 + $0x28] sm:$0xf]
      %v371 = vld [vmem:[%s5 + $0x2c] sm:$0xf]
      %v372 = vld [vmem:[%s5 + $0x30] sm:$0xf]
      %v373 = vld [vmem:[%s5 + $0x34] sm:$0xf]
      %v374 = vld [vmem:[%s5 + $0x38] sm:$0xf]
      %v375 = vld [vmem:[%s5 + $0x3c] sm:$0xf]
      %v392 = vunpack.c.l.b16 %v360
      %v393 = vunpack.c.l.b16 %v361
      %v394 = vunpack.c.l.b16 %v362
      %v395 = vunpack.c.l.b16 %v363
      %v396 = vunpack.c.l.b16 %v364
      %v397 = vunpack.c.l.b16 %v365
      %v398 = vunpack.c.l.b16 %v366
      %v399 = vunpack.c.l.b16 %v367
      %v400 = vunpack.c.l.b16 %v368
      %v401 = vunpack.c.l.b16 %v369
      %v402 = vunpack.c.l.b16 %v370
      %v403 = vunpack.c.l.b16 %v371
      %v404 = vunpack.c.l.b16 %v372
      %v405 = vunpack.c.l.b16 %v373
      %v406 = vunpack.c.l.b16 %v374
      %v407 = vunpack.c.l.b16 %v375
      %v408 = vpack.c.b16 %v393, %v392
      %v409 = vpack.c.b16 %v395, %v394
      %v410 = vpack.c.b16 %v397, %v396
      %v411 = vpack.c.b16 %v399, %v398
      %v412 = vpack.c.b16 %v401, %v400
      %v413 = vpack.c.b16 %v403, %v402
      %v414 = vpack.c.b16 %v405, %v404
      %v415 = vpack.c.b16 %v407, %v406
      %424 = vmatprep.subr.bf16.mxu0 0
      %425 = vmatpush1.bf16.msra.mxu0 %v415
      %426 = vmatprep.subr.bf16.mxu0 0
      %427 = vmatpush1.bf16.msra.mxu0 %v414
      %428 = vmatprep.subr.bf16.mxu0 0
      %429 = vmatpush1.bf16.msra.mxu0 %v413
      %430 = vmatprep.subr.bf16.mxu0 0
      %431 = vmatpush1.bf16.msra.mxu0 %v412
      %432 = vmatprep.subr.bf16.mxu0 0
      %433 = vmatpush1.bf16.msra.mxu0 %v411
      %434 = vmatprep.subr.bf16.mxu0 0
      %435 = vmatpush1.bf16.msra.mxu0 %v410
      %436 = vmatprep.subr.bf16.mxu0 0
      %437 = vmatpush1.bf16.msra.mxu0 %v409
      %438 = vmatprep.subr.bf16.mxu0 0
      %439 = vmatpush1.bf16.msra.mxu0 %v408
      %440 = vmatprep.subr.bf16.mxu0 0
      %441 = vmatpush2.bf16.msra.mxu0 0
      %442 = vmatprep.subr.bf16.mxu0 0
      %443 = vmatpush2.bf16.msra.mxu0 0
      %444 = vmatprep.subr.bf16.mxu0 0
      %445 = vmatpush2.bf16.msra.mxu0 0
      %446 = vmatprep.subr.bf16.mxu0 0
      %447 = vmatpush2.bf16.msra.mxu0 0
      %448 = vmatprep.subr.bf16.mxu0 0
      %449 = vmatpush2.bf16.msra.mxu0 0
      %450 = vmatprep.subr.bf16.mxu0 0
      %451 = vmatpush2.bf16.msra.mxu0 0
      %452 = vmatprep.subr.bf16.mxu0 0
      %453 = vmatpush2.bf16.msra.mxu0 0
      %454 = vmatprep.subr.bf16.mxu0 0
      %455 = vmatpush2.bf16.msra.mxu0 0
      %456 = vmatprep.mubr.bf16.mxu0 0
      %457 = vmatmul.mubr.bf16.gmra.mxu0 %v359
      %v458 = vpop.f32.mrf.mxu0
      %v459 = vadd.f32 0.0, %v458
      %v460 = vpop.f32.mrf.mxu0
      %v461 = vpop.f32.mrf.mxu0
      %v462 = vadd.f32 0.0, %v461
      %v463 = vpop.f32.mrf.mxu0
      %464 = vdwg.mxu0
      %465 = vst [vmem:[%s302] sm:$0xff] %v459
      %466 = vst [vmem:[%s302 + $0x8] sm:$0xff] %v462
      %v467 = vld [vmem:[%s7] sm:$0x1]
      %v468 = vadd.f32 %v459, %v462
      %v469 = vrot.slane %v468, 4
      %v470 = vadd.f32 %v468, %v469
      %v471 = vrot.slane %v470, 2
      %v472 = vadd.f32 %v470, %v471
      %v473 = vrot.slane %v472, 1
      %v474 = vadd.f32 %v472, %v473
      %v475 = vadd.f32 %v467, %v474
      %476 = vst [vmem:[%s7] sm:$0x1] %v475
      %v477 = vld [vmem:[%s8] sm:$0x1]
      %v478 = vmul.f32 %v459, %v459
      %v479 = vmul.f32 %v462, %v462
      %v480 = vadd.f32 %v478, %v479
      %v481 = vrot.slane %v480, 4
      %v482 = vadd.f32 %v480, %v481
      %v483 = vrot.slane %v482, 2
      %v484 = vadd.f32 %v482, %v483
      %v485 = vrot.slane %v484, 1
      %v486 = vadd.f32 %v484, %v485
      %v487 = vadd.f32 %v477, %v486
      %488 = vst [vmem:[%s8] sm:$0x1] %v487
      %s489 = smul.u32 2, %s20
      %p490 = scmp.lt.s32.totalorder %s489, 7
      %s491 = scalar_select %p490, %s489, 7
      %s492 = smul.addr %s491, 8
      %s493 = scalar_lea.vmem %s6, %s492
      // Predicated region
      $region49: #{projection_head.4} parent=43 // pred_check
        %p494 = pneg %p169
      $region50: #{projection_head.4} parent=43 // pred_check_branch
        %496 = sbr.rel (%p494) target = $region52
      $region51: #{projection_head.4} parent=43 // pred_region
        %s497 = smul.u32 2, %s20
      $region52: #{projection_head.4} parent=43 // pred_fallthru
        _
      // Predicated region
      $region53: #{projection_head.4} parent=43 // pred_check
        %p498 = pneg %p190
      $region54: #{projection_head.4} parent=43 // pred_check_branch
        %500 = sbr.rel (%p498) target = $region56
      $region55: #{projection_head.4} parent=43 // pred_region
        _
      $region56: #{projection_head.4} parent=43 // pred_fallthru
        _
      // Predicated region
      $region57: #{projection_head.4} parent=43 // pred_check
        %p501 = pneg %p211
      $region58: #{projection_head.4} parent=43 // pred_check_branch
        %503 = sbr.rel (%p501) target = $region60
      $region59: #{projection_head.4} parent=43 // pred_region
        _
      $region60: #{projection_head.4} parent=43 // pred_fallthru
        _
      // Predicated region
      $region61: #{projection_head.4} parent=43 // pred_check
        %p504 = pneg %p190
      $region62: #{projection_head.4} parent=43 // pred_check_branch
        %506 = sbr.rel (%p504) target = $region64
      $region63: #{projection_head.4} parent=43 // pred_region
        _
      $region64: #{projection_head.4} parent=43 // pred_fallthru
        _
      // Predicated region
      $region65: #{projection_head.4} parent=43 // pred_check
        %p507 = pneg %p211
      $region66: #{projection_head.4} parent=43 // pred_check_branch
        %509 = sbr.rel (%p507) target = $region68
      $region67: #{projection_head.4} parent=43 // pred_region
        _
      $region68: #{projection_head.4} parent=43 // pred_fallthru
        _
    $region44: #{projection_head.4} parent=5 // pred_fallthru
      _
    %p510 = scmp.le.s32.totalorder 2, %s15
    // Predicated region
    $region69: #{projection_head.4} parent=5 // pred_check
      %p511 = pneg %p510
    $region70: #{projection_head.4} parent=5 // pred_check_branch
      %513 = sbr.rel (%p511) target = $region72
    $region71: #{projection_head.4} parent=5 // pred_region
      %s514 = ssub.s32 %s15, 2
      // Predicated region
      $region73: #{projection_head.4} parent=71 // pred_check
        %p515 = pneg %p175
      $region74: #{projection_head.4} parent=71 // pred_check_branch
        %517 = sbr.rel (%p515) target = $region76
      $region75: #{projection_head.4} parent=71 // pred_region
        %s518 = smul.u32 2, %s21
        %p519 = scmp.lt.s32.totalorder %s518, 7
        %s520 = scalar_select %p519, %s518, 7
        %s521 = smul.addr %s520, 8
        %s522 = scalar_lea.vmem %s6, %s521
      $region76: #{projection_head.4} parent=71 // pred_fallthru
        _
    $region72: #{projection_head.4} parent=5 // pred_fallthru
      _
  $region6: #{projection_head.4} parent=0 // loop_footer
    %s19 = sadd.s32 1, %s15
  $region7: #{projection_head.4} parent=0 // loop_footer_branch
    %14 = sbr.rel target = $region3
  $region8: #{projection_head.4} parent=0 // loop_exit
    _

// kernel: projection_head.3
$region0: #{projection_head.3}
  #allocation0 [shape = 'u32[]', space=smem, size = 0x4, offset = 0x4, fixed_abs, tag = 'smem constant byte address 0x4 - core index']
  #allocation1 [shape = 'u32[144,128]{1,0:T(1,128)}', space=vmem, size = 0x12000, scoped, tag = 'internal scratch']
  %s0 = inlined_call_operand.vmem [shape: bf16[64,128], index: 0, kind: input, shape index: {}]
  %s1 = inlined_call_operand.vmem [shape: bf16[128,128], index: 1, kind: input, shape index: {}]
  %s2 = inlined_call_operand.vmem [shape: f32[64,128], index: 2, kind: output, shape index: {0}]
  %s3 = inlined_call_operand.vmem [shape: f32[1,128], index: 3, kind: output, shape index: {1}]
  %s4 = inlined_call_operand.vmem [shape: f32[1,128], index: 4, kind: output, shape index: {2}]
  %5 = xla_tuple %s2, %s3, %s4
  %s6 = sld [smem:[#allocation0]]
  $region61: #{projection_head.3} parent=0
    _
  %s8 = ssub.s32 1, %s6
  %s9 = scalar_select 0, %s8, %s6
  loop: start=0, step=1, limit=6
  $region2: #{projection_head.3} parent=0 // loop_pre_header
    _
  $region3: #{projection_head.3} parent=0 // loop_header
    %s11 = sphi 0, %s15
    %p12 = scmp.ge.s32.totalorder %s11, 6
    %s21 = sphi 0, %s23
    %s24 = sphi 0, %s21
    %s25 = sphi 0, %s24
    %s41 = sphi 0, %s25
    %s45 = sphi 0, %s45
    %s47 = sphi 0, %s45
    %s48 = sphi 0, %s47
    %s62 = sphi 0, %s48
    %s68 = sphi 0, %s70
    %s71 = sphi 0, %s68
    %s72 = sphi 0, %s71
    %s88 = sphi 0, %s72
    %s92 = sphi 0, %s92
    %s94 = sphi 0, %s92
    %s95 = sphi 0, %s94
    %s109 = sphi 0, %s95
    %s113 = sphi 0, %s113
    %s115 = sphi 0, %s113
    %s116 = sphi 0, %s115
    %s130 = sphi 0, %s116
  $region4: #{projection_head.3} parent=0 // loop_header_branch
    %14 = sbr.rel (%p12) target = $region8
  $region5: #{projection_head.3} parent=0 // loop_body
    %s16 = ssub.s32 %s11, 1
    %s17 = ssub.s32 %s11, 2
    %s18 = sadd.s32 %s11, 1
    %s19 = ssub.s32 %s11, %s18
    %p20 = scmp.eq.s32.totalorder %s19, 0
    %s22 = sadd.s32 %s21, 1
    %s23 = scalar_select %p20, %s21, %s22
    %p26 = pneg %p20
    %p27 = scmp.eq.s32.totalorder %s11, 3
    %p28 = por %p26, %p27
    %p29 = scmp.ne.s32.totalorder %s21, %s24
    %p30 = scmp.eq.s32.totalorder %s11, 0
    %p31 = por %p29, %p30
    %p32 = scmp.ne.s32.totalorder %s21, %s24
    %p33 = scmp.eq.s32.totalorder %s16, 3
    %p34 = por %p32, %p33
    %p35 = scmp.ne.s32.totalorder %s24, %s25
    %p36 = scmp.eq.s32.totalorder %s16, 0
    %p37 = por %p35, %p36
    %p38 = scmp.ne.s32.totalorder %s24, %s25
    %p39 = scmp.eq.s32.totalorder %s17, 3
    %p40 = por %p38, %p39
    %p42 = scmp.ne.s32.totalorder %s25, %s41
    %p43 = scmp.eq.s32.totalorder %s17, 0
    %p44 = por %p42, %p43
    %s46 = sadd.s32 %s45, 1
    %p49 = scmp.eq.s32.totalorder %s11, 3
    %p50 = scmp.ne.s32.totalorder %s45, %s47
    %p51 = scmp.eq.s32.totalorder %s11, 0
    %p52 = por %p50, %p51
    %p53 = scmp.ne.s32.totalorder %s45, %s47
    %p54 = scmp.eq.s32.totalorder %s16, 3
    %p55 = por %p53, %p54
    %p56 = scmp.ne.s32.totalorder %s47, %s48
    %p57 = scmp.eq.s32.totalorder %s16, 0
    %p58 = por %p56, %p57
    %p59 = scmp.ne.s32.totalorder %s47, %s48
    %p60 = scmp.eq.s32.totalorder %s17, 3
    %p61 = por %p59, %p60
    %p63 = scmp.ne.s32.totalorder %s48, %s62
    %p64 = scmp.eq.s32.totalorder %s17, 0
    %p65 = por %p63, %p64
    %s66 = ssub.s32 %s11, %s18
    %p67 = scmp.eq.s32.totalorder %s66, 0
    %s69 = sadd.s32 %s68, 1
    %s70 = scalar_select %p67, %s68, %s69
    %p73 = pneg %p67
    %p74 = scmp.eq.s32.totalorder %s11, 3
    %p75 = por %p73, %p74
    %p76 = scmp.ne.s32.totalorder %s68, %s71
    %p77 = scmp.eq.s32.totalorder %s11, 0
    %p78 = por %p76, %p77
    %p79 = scmp.ne.s32.totalorder %s68, %s71
    %p80 = scmp.eq.s32.totalorder %s16, 3
    %p81 = por %p79, %p80
    %p82 = scmp.ne.s32.totalorder %s71, %s72
    %p83 = scmp.eq.s32.totalorder %s16, 0
    %p84 = por %p82, %p83
    %p85 = scmp.ne.s32.totalorder %s71, %s72
    %p86 = scmp.eq.s32.totalorder %s17, 3
    %p87 = por %p85, %p86
    %p89 = scmp.ne.s32.totalorder %s72, %s88
    %p90 = scmp.eq.s32.totalorder %s17, 0
    %p91 = por %p89, %p90
    %s93 = sadd.s32 %s92, 1
    %p96 = scmp.eq.s32.totalorder %s11, 3
    %p97 = scmp.ne.s32.totalorder %s92, %s94
    %p98 = scmp.eq.s32.totalorder %s11, 0
    %p99 = por %p97, %p98
    %p100 = scmp.ne.s32.totalorder %s92, %s94
    %p101 = scmp.eq.s32.totalorder %s16, 3
    %p102 = por %p100, %p101
    %p103 = scmp.ne.s32.totalorder %s94, %s95
    %p104 = scmp.eq.s32.totalorder %s16, 0
    %p105 = por %p103, %p104
    %p106 = scmp.ne.s32.totalorder %s94, %s95
    %p107 = scmp.eq.s32.totalorder %s17, 3
    %p108 = por %p106, %p107
    %p110 = scmp.ne.s32.totalorder %s95, %s109
    %p111 = scmp.eq.s32.totalorder %s17, 0
    %p112 = por %p110, %p111
    %s114 = sadd.s32 %s113, 1
    %p117 = scmp.eq.s32.totalorder %s11, 3
    %p118 = scmp.ne.s32.totalorder %s113, %s115
    %p119 = scmp.eq.s32.totalorder %s11, 0
    %p120 = por %p118, %p119
    %p121 = scmp.ne.s32.totalorder %s113, %s115
    %p122 = scmp.eq.s32.totalorder %s16, 3
    %p123 = por %p121, %p122
    %p124 = scmp.ne.s32.totalorder %s115, %s116
    %p125 = scmp.eq.s32.totalorder %s16, 0
    %p126 = por %p124, %p125
    %p127 = scmp.ne.s32.totalorder %s115, %s116
    %p128 = scmp.eq.s32.totalorder %s17, 3
    %p129 = por %p127, %p128
    %p131 = scmp.ne.s32.totalorder %s116, %s130
    %p132 = scmp.eq.s32.totalorder %s17, 0
    %p133 = por %p131, %p132
    %p134 = scmp.le.s32.totalorder 1, %s11
    %p135 = scmp.lt.s32.totalorder %s11, 5
    %p136 = pnand %p134, %p135
    %p137 = pneg %p136
    // Predicated region
    $region9: #{projection_head.3} parent=5 // pred_check
      _
    $region10: #{projection_head.3} parent=5 // pred_check_branch
      %139 = sbr.rel (%p136) target = $region12
    $region11: #{projection_head.3} parent=5 // pred_region
      %s140 = ssub.s32 %s11, 1
      // Predicated region
      $region13: #{projection_head.3} parent=11 // pred_check
        %p141 = pneg %p58
      $region14: #{projection_head.3} parent=11 // pred_check_branch
        %143 = sbr.rel (%p141) target = $region16
      $region15: #{projection_head.3} parent=11 // pred_region
        _
      $region16: #{projection_head.3} parent=11 // pred_fallthru
        _
    $region12: #{projection_head.3} parent=5 // pred_fallthru
      _
    %p144 = scmp.lt.s32.totalorder %s11, 4
    // Predicated region
    $region17: #{projection_head.3} parent=5 // pred_check
      %p145 = pneg %p144
    $region18: #{projection_head.3} parent=5 // pred_check_branch
      %147 = sbr.rel (%p145) target = $region20
    $region19: #{projection_head.3} parent=5 // pred_region
      // Predicated region
      $region21: #{projection_head.3} parent=19 // pred_check
        %p148 = pneg %p31
      $region22: #{projection_head.3} parent=19 // pred_check_branch
        %150 = sbr.rel (%p148) target = $region24
      $region23: #{projection_head.3} parent=19 // pred_region
        %s151 = smul.u32 2, %s11
        %p152 = scmp.lt.s32.totalorder %s151, 7
        %s153 = scalar_select %p152, %s151, 7
        %s154 = smul.addr %s153, 4
        %s155 = scalar_lea.vmem %s0, %s154
        %s156 = smul.u32 2, %s11
      $region24: #{projection_head.3} parent=19 // pred_fallthru
        _
    $region20: #{projection_head.3} parent=5 // pred_fallthru
      _
    %p157 = scmp.le.s32.totalorder 1, %s11
    %p158 = scmp.lt.s32.totalorder %s11, 5
    %p159 = pnand %p157, %p158
    %p160 = pneg %p159
    // Predicated region
    $region25: #{projection_head.3} parent=5 // pred_check
      _
    $region26: #{projection_head.3} parent=5 // pred_check_branch
      %162 = sbr.rel (%p159) target = $region28
    $region27: #{projection_head.3} parent=5 // pred_region
      %s163 = ssub.s32 %s11, 1
      %s164 = smul.u32 2, %s16
      %p165 = scmp.lt.s32.totalorder %s164, 7
      %s166 = scalar_select %p165, %s164, 7
      %s167 = smul.addr %s166, 4
      %s168 = scalar_lea.vmem %s0, %s167
      %p169 = pneg %p37
      %p170 = pneg %p34
      %p171 = pneg %p58
      %p172 = pneg %p55
      %p173 = pneg %p84
      %p174 = pneg %p81
      %s175 = smul.u32 2, %s16
      %p176 = scmp.lt.s32.totalorder %s175, 7
      %s177 = scalar_select %p176, %s175, 7
      %s178 = smul.addr %s177, 8
      %s179 = scalar_lea.vmem %s2, %s178
      %p180 = pneg %p105
      %p181 = pneg %p102
      %p182 = pneg %p126
      %p183 = pneg %p123
      %s184 = smul.u32 2, %s16
      %p185 = scmp.lt.s32.totalorder %s184, 7
      %s186 = scalar_select %p185, %s184, 7
      %s187 = smul.addr %s186, 4
      %s188 = scalar_lea.vmem %s0, %s187
      %s189 = smul.u32 2, %s16
      %s190 = smul.u32 2, %s16
      %p191 = scmp.lt.s32.totalorder %s190, 7
      %s192 = scalar_select %p191, %s190, 7
      %s193 = smul.addr %s192, 8
      %s194 = scalar_lea.vmem %s2, %s193
      %s195 = smul.u32 2, %s16
      %p197 = scmp.eq.s32.totalorder %s16, 0
      // Predicated region
      $region29: #{projection_head.3} parent=27 // pred_check
        %p198 = pneg %p197
      $region30: #{projection_head.3} parent=27 // pred_check_branch
        %200 = sbr.rel (%p198) target = $region32
      $region31: #{projection_head.3} parent=27 // pred_region
        %201 = vst [vmem:[%s3] sm:$0x1] 0.0
        %202 = vst [vmem:[%s4] sm:$0x1] 0.0
      $region32: #{projection_head.3} parent=27 // pred_fallthru
        _
      %v203 = vld [vmem:[%s188] sm:$0xf]
      %v204 = vld [vmem:[%s188 + $0x4] sm:$0xf]
      %v205 = vld [vmem:[%s1] sm:$0xf]
      %v206 = vld [vmem:[%s1 + $0x4] sm:$0xf]
      %v207 = vld [vmem:[%s1 + $0x8] sm:$0xf]
      %v208 = vld [vmem:[%s1 + $0xc] sm:$0xf]
      %v209 = vld [vmem:[%s1 + $0x10] sm:$0xf]
      %v210 = vld [vmem:[%s1 + $0x14] sm:$0xf]
      %v211 = vld [vmem:[%s1 + $0x18] sm:$0xf]
      %v212 = vld [vmem:[%s1 + $0x1c] sm:$0xf]
      %v213 = vld [vmem:[%s1 + $0x20] sm:$0xf]
      %v214 = vld [vmem:[%s1 + $0x24] sm:$0xf]
      %v215 = vld [vmem:[%s1 + $0x28] sm:$0xf]
      %v216 = vld [vmem:[%s1 + $0x2c] sm:$0xf]
      %v217 = vld [vmem:[%s1 + $0x30] sm:$0xf]
      %v218 = vld [vmem:[%s1 + $0x34] sm:$0xf]
      %v219 = vld [vmem:[%s1 + $0x38] sm:$0xf]
      %v220 = vld [vmem:[%s1 + $0x3c] sm:$0xf]
      %v223 = vunpack.c.l.b16 %v203
      %v224 = vunpack.c.l.b16 %v204
      %v225 = vpack.c.b16 %v224, %v223
      %v243 = vunpack.c.l.b16 %v205
      %v244 = vunpack.c.l.b16 %v206
      %v245 = vunpack.c.l.b16 %v207
      %v246 = vunpack.c.l.b16 %v208
      %v247 = vunpack.c.l.b16 %v209
      %v248 = vunpack.c.l.b16 %v210
      %v249 = vunpack.c.l.b16 %v211
      %v250 = vunpack.c.l.b16 %v212
      %v251 = vunpack.c.l.b16 %v213
      %v252 = vunpack.c.l.b16 %v214
      %v253 = vunpack.c.l.b16 %v215
      %v254 = vunpack.c.l.b16 %v216
      %v255 = vunpack.c.l.b16 %v217
      %v256 = vunpack.c.l.b16 %v218
      %v257 = vunpack.c.l.b16 %v219
      %v258 = vunpack.c.l.b16 %v220
      %v259 = vpack.c.b16 %v244, %v243
      %v260 = vpack.c.b16 %v246, %v245
      %v261 = vpack.c.b16 %v248, %v247
      %v262 = vpack.c.b16 %v250, %v249
      %v263 = vpack.c.b16 %v252, %v251
      %v264 = vpack.c.b16 %v254, %v253
      %v265 = vpack.c.b16 %v256, %v255
      %v266 = vpack.c.b16 %v258, %v257
      %275 = vmatprep.subr.bf16.mxu0 0
      %276 = vmatpush1.bf16.msra.mxu0 %v266
      %277 = vmatprep.subr.bf16.mxu0 0
      %278 = vmatpush1.bf16.msra.mxu0 %v265
      %279 = vmatprep.subr.bf16.mxu0 0
      %280 = vmatpush1.bf16.msra.mxu0 %v264
      %281 = vmatprep.subr.bf16.mxu0 0
      %282 = vmatpush1.bf16.msra.mxu0 %v263
      %283 = vmatprep.subr.bf16.mxu0 0
      %284 = vmatpush1.bf16.msra.mxu0 %v262
      %285 = vmatprep.subr.bf16.mxu0 0
      %286 = vmatpush1.bf16.msra.mxu0 %v261
      %287 = vmatprep.subr.bf16.mxu0 0
      %288 = vmatpush1.bf16.msra.mxu0 %v260
      %289 = vmatprep.subr.bf16.mxu0 0
      %290 = vmatpush1.bf16.msra.mxu0 %v259
      %291 = vmatprep.subr.bf16.mxu0 0
      %292 = vmatpush2.bf16.msra.mxu0 0
      %293 = vmatprep.subr.bf16.mxu0 0
      %294 = vmatpush2.bf16.msra.mxu0 0
      %295 = vmatprep.subr.bf16.mxu0 0
      %296 = vmatpush2.bf16.msra.mxu0 0
      %297 = vmatprep.subr.bf16.mxu0 0
      %298 = vmatpush2.bf16.msra.mxu0 0
      %299 = vmatprep.subr.bf16.mxu0 0
      %300 = vmatpush2.bf16.msra.mxu0 0
      %301 = vmatprep.subr.bf16.mxu0 0
      %302 = vmatpush2.bf16.msra.mxu0 0
      %303 = vmatprep.subr.bf16.mxu0 0
      %304 = vmatpush2.bf16.msra.mxu0 0
      %305 = vmatprep.subr.bf16.mxu0 0
      %306 = vmatpush2.bf16.msra.mxu0 0
      %307 = vmatprep.mubr.bf16.mxu0 0
      %308 = vmatmul.mubr.bf16.gmra.mxu0 %v225
      %v309 = vpop.f32.mrf.mxu0
      %v310 = vadd.f32 0.0, %v309
      %v311 = vpop.f32.mrf.mxu0
      %v312 = vpop.f32.mrf.mxu0
      %v313 = vadd.f32 0.0, %v312
      %v314 = vpop.f32.mrf.mxu0
      %315 = vdwg.mxu0
      %316 = vst [vmem:[%s194] sm:$0xff] %v310
      %317 = vst [vmem:[%s194 + $0x8] sm:$0xff] %v313
      %v318 = vld [vmem:[%s3] sm:$0x1]
      %v319 = vadd.f32 %v310, %v313
      %v320 = vrot.slane %v319, 4
      %v321 = vadd.f32 %v319, %v320
      %v322 = vrot.slane %v321, 2
      %v323 = vadd.f32 %v321, %v322
      %v324 = vrot.slane %v323, 1
      %v325 = vadd.f32 %v323, %v324
      %v326 = vadd.f32 %v318, %v325
      %327 = vst [vmem:[%s3] sm:$0x1] %v326
      %v328 = vld [vmem:[%s4] sm:$0x1]
      %v329 = vmul.f32 %v310, %v310
      %v330 = vmul.f32 %v313, %v313
      %v331 = vadd.f32 %v329, %v330
      %v332 = vrot.slane %v331, 4
      %v333 = vadd.f32 %v331, %v332
      %v334 = vrot.slane %v333, 2
      %v335 = vadd.f32 %v333, %v334
      %v336 = vrot.slane %v335, 1
      %v337 = vadd.f32 %v335, %v336
      %v338 = vadd.f32 %v328, %v337
      %339 = vst [vmem:[%s4] sm:$0x1] %v338
      %s340 = smul.u32 2, %s16
      %p341 = scmp.lt.s32.totalorder %s340, 7
      %s342 = scalar_select %p341, %s340, 7
      %s343 = smul.addr %s342, 8
      %s344 = scalar_lea.vmem %s2, %s343
      // Predicated region
      $region33: #{projection_head.3} parent=27 // pred_check
        %p345 = pneg %p81
      $region34: #{projection_head.3} parent=27 // pred_check_branch
        %347 = sbr.rel (%p345) target = $region36
      $region35: #{projection_head.3} parent=27 // pred_region
        %s348 = smul.u32 2, %s16
      $region36: #{projection_head.3} parent=27 // pred_fallthru
        _
      // Predicated region
      $region37: #{projection_head.3} parent=27 // pred_check
        %p349 = pneg %p102
      $region38: #{projection_head.3} parent=27 // pred_check_branch
        %351 = sbr.rel (%p349) target = $region40
      $region39: #{projection_head.3} parent=27 // pred_region
        _
      $region40: #{projection_head.3} parent=27 // pred_fallthru
        _
      // Predicated region
      $region41: #{projection_head.3} parent=27 // pred_check
        %p352 = pneg %p123
      $region42: #{projection_head.3} parent=27 // pred_check_branch
        %354 = sbr.rel (%p352) target = $region44
      $region43: #{projection_head.3} parent=27 // pred_region
        _
      $region44: #{projection_head.3} parent=27 // pred_fallthru
        _
      // Predicated region
      $region45: #{projection_head.3} parent=27 // pred_check
        %p355 = pneg %p102
      $region46: #{projection_head.3} parent=27 // pred_check_branch
        %357 = sbr.rel (%p355) target = $region48
      $region47: #{projection_head.3} parent=27 // pred_region
        _
      $region48: #{projection_head.3} parent=27 // pred_fallthru
        _
      // Predicated region
      $region49: #{projection_head.3} parent=27 // pred_check
        %p358 = pneg %p123
      $region50: #{projection_head.3} parent=27 // pred_check_branch
        %360 = sbr.rel (%p358) target = $region52
      $region51: #{projection_head.3} parent=27 // pred_region
        _
      $region52: #{projection_head.3} parent=27 // pred_fallthru
        _
    $region28: #{projection_head.3} parent=5 // pred_fallthru
      _
    %p361 = scmp.le.s32.totalorder 2, %s11
    // Predicated region
    $region53: #{projection_head.3} parent=5 // pred_check
      %p362 = pneg %p361
    $region54: #{projection_head.3} parent=5 // pred_check_branch
      %364 = sbr.rel (%p362) target = $region56
    $region55: #{projection_head.3} parent=5 // pred_region
      %s365 = ssub.s32 %s11, 2
      // Predicated region
      $region57: #{projection_head.3} parent=55 // pred_check
        %p366 = pneg %p87
      $region58: #{projection_head.3} parent=55 // pred_check_branch
        %368 = sbr.rel (%p366) target = $region60
      $region59: #{projection_head.3} parent=55 // pred_region
        %s369 = smul.u32 2, %s17
        %p370 = scmp.lt.s32.totalorder %s369, 7
        %s371 = scalar_select %p370, %s369, 7
        %s372 = smul.addr %s371, 8
        %s373 = scalar_lea.vmem %s2, %s372
      $region60: #{projection_head.3} parent=55 // pred_fallthru
        _
    $region56: #{projection_head.3} parent=5 // pred_fallthru
      _
  $region6: #{projection_head.3} parent=0 // loop_footer
    %s15 = sadd.s32 1, %s11
  $region7: #{projection_head.3} parent=0 // loop_footer_branch
    %10 = sbr.rel target = $region3
  $region8: #{projection_head.3} parent=0 // loop_exit
    _

</llo_original>
